<compile_context>
chip_gen: v7x
topology: tpu7x:2x2x1
jax: 0.10.0
libtpu: 0.0.40
codegen_flags: <defaults>
</compile_context>

<pallas_src>
import functools

import jax
import jax.numpy as jnp
from jax.experimental import pallas as pl
from jax.experimental.pallas import tpu as pltpu


def _conv_in_lrelu_kernel(x_ref, w_ref, o_ref, *, H, W, kh, kw, eps, slope):
    # x_ref: (1, Cin, H*W)       image, channels-major, spatial flattened on the lane axis
    # w_ref: (kh*kw, Cout, Cin)  one (Cout, Cin) weight slab per conv tap
    # o_ref: (1, Cout, Ho, Wo)   NCHW output block
    Ho = H - kh + 1
    Wo = W - kw + 1
    L = (Ho - 1) * W + Wo            # flattened span covering every valid output position

    x = x_ref[0]                     # (Cin, H*W), native dtype (bf16 stays bf16)

    # Convolution:
    #   out[co, y*W + xc] = sum_{dy,dx,ci} w[co,ci,dy,dx] * in[ci, (y+dy)*W + (xc+dx)]
    # Each tap is a statically shifted lane-slice of the flattened image (no reshape,
    # no relayout) contracted on the MXU with f32 accumulation. Columns with xc >= Wo
    # wrap across image rows: they are excluded from the stats and never stored.
    acc = None
    for t in range(kh * kw):
        dy, dx = divmod(t, kw)
        start = dy * W + dx
        contrib = jnp.dot(w_ref[t], x[:, start:start + L],
                          preferred_element_type=jnp.float32)   # (Cout, L) f32
        acc = contrib if acc is None else acc + contrib

    # InstanceNorm2d (affine=False, biased variance, eps=1e-5): per-channel stats over
    # the Ho*Wo valid positions, computed in one masked sweep (f32 sum / sum-of-squares).
    col = jax.lax.broadcasted_iota(jnp.int32, (1, L), 1) % W
    valid = col < Wo                                            # (1, L)
    acc_m = jnp.where(valid, acc, 0.0)
    inv_n = 1.0 / (Ho * Wo)
    mean = jnp.sum(acc_m, axis=1, keepdims=True) * inv_n        # (Cout, 1)
    var = jnp.sum(acc_m * acc_m, axis=1, keepdims=True) * inv_n - mean * mean
    var = jnp.maximum(var, 0.0)                                 # guard tiny negatives
    y = (acc - mean) * jax.lax.rsqrt(var + eps)

    # LeakyReLU(negative_slope=0.01)
    y = jnp.where(y >= 0, y, slope * y)

    # Store the valid Wo columns of each output row straight into the NCHW block.
    for r in range(Ho):
        o_ref[0, :, r, :] = y[:, r * W:r * W + Wo].astype(o_ref.dtype)


def conv_inorm_lrelu(x_nchw, weight_oihw, bias=None, *, eps=1e-5, slope=0.01):
    """Fused Conv2d(k, s=1, p=0) -> InstanceNorm2d -> LeakyReLU. NCHW in, NCHW out.

    `bias` is accepted for nn.Conv2d API parity but unused: a per-channel constant is
    mathematically cancelled by the affine=False InstanceNorm mean subtraction.
    """
    del bias
    N, Cin, H, W = x_nchw.shape
    Cout, _, kh, kw = weight_oihw.shape
    Ho, Wo = H - kh + 1, W - kw + 1

    # Free metadata-only flatten of the spatial axes (no transpose of the activations).
    x_flat = x_nchw.reshape(N, Cin, H * W)
    # (Cout, Cin, kh, kw) -> (kh*kw, Cout, Cin): one contraction slab per tap (tiny).
    w_taps = jnp.transpose(weight_oihw, (2, 3, 0, 1)).reshape(kh * kw, Cout, Cin)

    kernel = functools.partial(_conv_in_lrelu_kernel,
                               H=H, W=W, kh=kh, kw=kw, eps=eps, slope=slope)

    return pl.pallas_call(
        kernel,
        out_shape=jax.ShapeDtypeStruct((N, Cout, Ho, Wo), x_nchw.dtype),
        grid_spec=pltpu.PrefetchScalarGridSpec(
            num_scalar_prefetch=0,
            grid=(N,),
            in_specs=[
                pl.BlockSpec((1, Cin, H * W), lambda n: (n, 0, 0)),
                pl.BlockSpec((kh * kw, Cout, Cin), lambda n: (0, 0, 0)),
            ],
            out_specs=pl.BlockSpec((1, Cout, Ho, Wo), lambda n: (n, 0, 0, 0)),
        ),
        compiler_params=pltpu.CompilerParams(
            dimension_semantics=("parallel",),
            vmem_limit_bytes=32 * 1024 * 1024,
        ),
    )(x_flat, w_taps)


def _reference(x_nchw, weight_oihw, bias, eps=1e-5, slope=0.01):
    y = jax.lax.conv_general_dilated(
        x_nchw.astype(jnp.float32), weight_oihw.astype(jnp.float32),
        window_strides=(1, 1), padding="VALID",
        dimension_numbers=("NCHW", "OIHW", "NCHW"))
    y = y + bias.astype(jnp.float32)[None, :, None, None]
    mean = y.mean(axis=(2, 3), keepdims=True)
    var = ((y - mean) ** 2).mean(axis=(2, 3), keepdims=True)
    yn = (y - mean) / jnp.sqrt(var + eps)
    return jnp.where(yn >= 0, yn, slope * yn)


if __name__ == "__main__":
    key = jax.random.PRNGKey(0)
    kx, kwt, kb = jax.random.split(key, 3)

    N, Cin, Cout, H, W, K = 2, 4, 8, 16, 16, 3
    x = jax.random.normal(kx, (N, Cin, H, W), dtype=jnp.float32)
    weight = jax.random.normal(kwt, (Cout, Cin, K, K), dtype=jnp.float32) * 0.1
    bias = jax.random.normal(kb, (Cout,), dtype=jnp.float32) * 0.1

    out = conv_inorm_lrelu(x, weight, bias)      # bias ignored (cancelled by InstanceNorm)
    out = jax.block_until_ready(out)

    ref = _reference(x, weight, bias)            # reference keeps the bias -> proves cancellation
    assert out.shape == (N, Cout, H - K + 1, W - K + 1), out.shape
    max_err = float(jnp.max(jnp.abs(out - ref)))
    assert max_err < 1e-4, max_err

    print("KERNEL_OK")
</pallas_src>

<mosaic_0001>
module attributes {stable_mosaic.version = 11 : i64} {
  func.func @_conv_in_lrelu_kernel(%arg0: i32, %arg1: memref<1x4x256xf32, #tpu.memory_space<vmem>>, %arg2: memref<9x8x4xf32, #tpu.memory_space<vmem>>, %arg3: memref<1x8x14x14xf32, #tpu.memory_space<vmem>>) attributes {dimension_semantics = [#tpu.dimension_semantics<parallel>], iteration_bounds = array<i64: 2>, scalar_prefetch = 0 : i64, scratch_operands = 0 : i64, tpu.core_type = #tpu.core_type<tc>, window_params = [{transform_indices = @transform_0, window_bounds = array<i64: 1, 4, 256>}, {pipeline_mode = #tpu.pipeline_mode<synchronous>, transform_indices = @transform_1, window_bounds = array<i64: 9, 8, 4>}, {transform_indices = @transform_2, window_bounds = array<i64: 1, 8, 14, 14>}]} {
    %c0 = arith.constant 0 : index
    %c0_0 = arith.constant 0 : index
    %c0_1 = arith.constant 0 : index
    %0 = vector.load %arg1[%c0, %c0_0, %c0_1] : memref<1x4x256xf32, #tpu.memory_space<vmem>>, vector<1x4x256xf32>
    %1 = vector.shape_cast %0 : vector<1x4x256xf32> to vector<4x256xf32>
    %c0_2 = arith.constant 0 : index
    %c0_3 = arith.constant 0 : index
    %c0_4 = arith.constant 0 : index
    %2 = vector.load %arg2[%c0_2, %c0_3, %c0_4] : memref<9x8x4xf32, #tpu.memory_space<vmem>>, vector<1x8x4xf32>
    %3 = vector.shape_cast %2 : vector<1x8x4xf32> to vector<8x4xf32>
    %4 = vector.extract_strided_slice %1 {offsets = [0, 0], sizes = [4, 222], strides = [1, 1]} : vector<4x256xf32> to vector<4x222xf32>
    %cst = arith.constant dense<0.000000e+00> : vector<8x222xf32>
    %5 = tpu.matmul %3, %4, %cst {dimension_numbers = #tpu.dot_dimension_numbers<[1], [0], [0], [1], [0, 0, 1, 1], [], []>} : vector<8x4xf32>, vector<4x222xf32>, vector<8x222xf32> -> vector<8x222xf32>
    %c1 = arith.constant 1 : index
    %c0_5 = arith.constant 0 : index
    %c0_6 = arith.constant 0 : index
    %6 = vector.load %arg2[%c1, %c0_5, %c0_6] : memref<9x8x4xf32, #tpu.memory_space<vmem>>, vector<1x8x4xf32>
    %7 = vector.shape_cast %6 : vector<1x8x4xf32> to vector<8x4xf32>
    %8 = vector.extract_strided_slice %1 {offsets = [0, 1], sizes = [4, 222], strides = [1, 1]} : vector<4x256xf32> to vector<4x222xf32>
    %cst_7 = arith.constant dense<0.000000e+00> : vector<8x222xf32>
    %9 = tpu.matmul %7, %8, %cst_7 {dimension_numbers = #tpu.dot_dimension_numbers<[1], [0], [0], [1], [0, 0, 1, 1], [], []>} : vector<8x4xf32>, vector<4x222xf32>, vector<8x222xf32> -> vector<8x222xf32>
    %10 = arith.addf %5, %9 : vector<8x222xf32>
    %c2 = arith.constant 2 : index
    %c0_8 = arith.constant 0 : index
    %c0_9 = arith.constant 0 : index
    %11 = vector.load %arg2[%c2, %c0_8, %c0_9] : memref<9x8x4xf32, #tpu.memory_space<vmem>>, vector<1x8x4xf32>
    %12 = vector.shape_cast %11 : vector<1x8x4xf32> to vector<8x4xf32>
    %13 = vector.extract_strided_slice %1 {offsets = [0, 2], sizes = [4, 222], strides = [1, 1]} : vector<4x256xf32> to vector<4x222xf32>
    %cst_10 = arith.constant dense<0.000000e+00> : vector<8x222xf32>
    %14 = tpu.matmul %12, %13, %cst_10 {dimension_numbers = #tpu.dot_dimension_numbers<[1], [0], [0], [1], [0, 0, 1, 1], [], []>} : vector<8x4xf32>, vector<4x222xf32>, vector<8x222xf32> -> vector<8x222xf32>
    %15 = arith.addf %10, %14 : vector<8x222xf32>
    %c3 = arith.constant 3 : index
    %c0_11 = arith.constant 0 : index
    %c0_12 = arith.constant 0 : index
    %16 = vector.load %arg2[%c3, %c0_11, %c0_12] : memref<9x8x4xf32, #tpu.memory_space<vmem>>, vector<1x8x4xf32>
    %17 = vector.shape_cast %16 : vector<1x8x4xf32> to vector<8x4xf32>
    %18 = vector.extract_strided_slice %1 {offsets = [0, 16], sizes = [4, 222], strides = [1, 1]} : vector<4x256xf32> to vector<4x222xf32>
    %cst_13 = arith.constant dense<0.000000e+00> : vector<8x222xf32>
    %19 = tpu.matmul %17, %18, %cst_13 {dimension_numbers = #tpu.dot_dimension_numbers<[1], [0], [0], [1], [0, 0, 1, 1], [], []>} : vector<8x4xf32>, vector<4x222xf32>, vector<8x222xf32> -> vector<8x222xf32>
    %20 = arith.addf %15, %19 : vector<8x222xf32>
    %c4 = arith.constant 4 : index
    %c0_14 = arith.constant 0 : index
    %c0_15 = arith.constant 0 : index
    %21 = vector.load %arg2[%c4, %c0_14, %c0_15] : memref<9x8x4xf32, #tpu.memory_space<vmem>>, vector<1x8x4xf32>
    %22 = vector.shape_cast %21 : vector<1x8x4xf32> to vector<8x4xf32>
    %23 = vector.extract_strided_slice %1 {offsets = [0, 17], sizes = [4, 222], strides = [1, 1]} : vector<4x256xf32> to vector<4x222xf32>
    %cst_16 = arith.constant dense<0.000000e+00> : vector<8x222xf32>
    %24 = tpu.matmul %22, %23, %cst_16 {dimension_numbers = #tpu.dot_dimension_numbers<[1], [0], [0], [1], [0, 0, 1, 1], [], []>} : vector<8x4xf32>, vector<4x222xf32>, vector<8x222xf32> -> vector<8x222xf32>
    %25 = arith.addf %20, %24 : vector<8x222xf32>
    %c5 = arith.constant 5 : index
    %c0_17 = arith.constant 0 : index
    %c0_18 = arith.constant 0 : index
    %26 = vector.load %arg2[%c5, %c0_17, %c0_18] : memref<9x8x4xf32, #tpu.memory_space<vmem>>, vector<1x8x4xf32>
    %27 = vector.shape_cast %26 : vector<1x8x4xf32> to vector<8x4xf32>
    %28 = vector.extract_strided_slice %1 {offsets = [0, 18], sizes = [4, 222], strides = [1, 1]} : vector<4x256xf32> to vector<4x222xf32>
    %cst_19 = arith.constant dense<0.000000e+00> : vector<8x222xf32>
    %29 = tpu.matmul %27, %28, %cst_19 {dimension_numbers = #tpu.dot_dimension_numbers<[1], [0], [0], [1], [0, 0, 1, 1], [], []>} : vector<8x4xf32>, vector<4x222xf32>, vector<8x222xf32> -> vector<8x222xf32>
    %30 = arith.addf %25, %29 : vector<8x222xf32>
    %c6 = arith.constant 6 : index
    %c0_20 = arith.constant 0 : index
    %c0_21 = arith.constant 0 : index
    %31 = vector.load %arg2[%c6, %c0_20, %c0_21] : memref<9x8x4xf32, #tpu.memory_space<vmem>>, vector<1x8x4xf32>
    %32 = vector.shape_cast %31 : vector<1x8x4xf32> to vector<8x4xf32>
    %33 = vector.extract_strided_slice %1 {offsets = [0, 32], sizes = [4, 222], strides = [1, 1]} : vector<4x256xf32> to vector<4x222xf32>
    %cst_22 = arith.constant dense<0.000000e+00> : vector<8x222xf32>
    %34 = tpu.matmul %32, %33, %cst_22 {dimension_numbers = #tpu.dot_dimension_numbers<[1], [0], [0], [1], [0, 0, 1, 1], [], []>} : vector<8x4xf32>, vector<4x222xf32>, vector<8x222xf32> -> vector<8x222xf32>
    %35 = arith.addf %30, %34 : vector<8x222xf32>
    %c7 = arith.constant 7 : index
    %c0_23 = arith.constant 0 : index
    %c0_24 = arith.constant 0 : index
    %36 = vector.load %arg2[%c7, %c0_23, %c0_24] : memref<9x8x4xf32, #tpu.memory_space<vmem>>, vector<1x8x4xf32>
    %37 = vector.shape_cast %36 : vector<1x8x4xf32> to vector<8x4xf32>
    %38 = vector.extract_strided_slice %1 {offsets = [0, 33], sizes = [4, 222], strides = [1, 1]} : vector<4x256xf32> to vector<4x222xf32>
    %cst_25 = arith.constant dense<0.000000e+00> : vector<8x222xf32>
    %39 = tpu.matmul %37, %38, %cst_25 {dimension_numbers = #tpu.dot_dimension_numbers<[1], [0], [0], [1], [0, 0, 1, 1], [], []>} : vector<8x4xf32>, vector<4x222xf32>, vector<8x222xf32> -> vector<8x222xf32>
    %40 = arith.addf %35, %39 : vector<8x222xf32>
    %c8 = arith.constant 8 : index
    %c0_26 = arith.constant 0 : index
    %c0_27 = arith.constant 0 : index
    %41 = vector.load %arg2[%c8, %c0_26, %c0_27] : memref<9x8x4xf32, #tpu.memory_space<vmem>>, vector<1x8x4xf32>
    %42 = vector.shape_cast %41 : vector<1x8x4xf32> to vector<8x4xf32>
    %43 = vector.extract_strided_slice %1 {offsets = [0, 34], sizes = [4, 222], strides = [1, 1]} : vector<4x256xf32> to vector<4x222xf32>
    %cst_28 = arith.constant dense<0.000000e+00> : vector<8x222xf32>
    %44 = tpu.matmul %42, %43, %cst_28 {dimension_numbers = #tpu.dot_dimension_numbers<[1], [0], [0], [1], [0, 0, 1, 1], [], []>} : vector<8x4xf32>, vector<4x222xf32>, vector<8x222xf32> -> vector<8x222xf32>
    %45 = arith.addf %40, %44 : vector<8x222xf32>
    %46 = tpu.iota {dimensions = array<i32: 1>} : vector<1x222xi32>
    %c16_i32 = arith.constant 16 : i32
    %c0_i32 = arith.constant 0 : i32
    %47 = arith.cmpi eq, %c16_i32, %c0_i32 : i32
    %c1_i32 = arith.constant 1 : i32
    %48 = arith.select %47, %c1_i32, %c16_i32 : i32
    %49 = vector.broadcast %48 : i32 to vector<1x222xi32>
    %50 = arith.remsi %46, %49 : vector<1x222xi32>
    %c0_i32_29 = arith.constant 0 : i32
    %51 = vector.broadcast %c0_i32_29 : i32 to vector<1x222xi32>
    %52 = arith.cmpi ne, %50, %51 : vector<1x222xi32>
    %c0_i32_30 = arith.constant 0 : i32
    %53 = vector.broadcast %c0_i32_30 : i32 to vector<1x222xi32>
    %54 = arith.cmpi slt, %50, %53 : vector<1x222xi32>
    %c0_i32_31 = arith.constant 0 : i32
    %55 = arith.cmpi slt, %48, %c0_i32_31 : i32
    %56 = vector.broadcast %55 : i1 to vector<1x222xi1>
    %57 = vector.broadcast %56 : vector<1x222xi1> to vector<1x222xi1>
    %58 = arith.xori %54, %57 : vector<1x222xi1>
    %59 = arith.andi %58, %52 : vector<1x222xi1>
    %60 = vector.broadcast %48 : i32 to vector<1x222xi32>
    %61 = arith.addi %50, %60 : vector<1x222xi32>
    %62 = arith.select %59, %61, %50 : vector<1x222xi1>, vector<1x222xi32>
    %c14_i32 = arith.constant 14 : i32
    %63 = vector.broadcast %c14_i32 : i32 to vector<1x222xi32>
    %64 = arith.cmpi slt, %62, %63 : vector<1x222xi32>
    %cst_32 = arith.constant 0.000000e+00 : f32
    %65 = vector.shape_cast %64 : vector<1x222xi1> to vector<1x222xi1>
    %66 = vector.broadcast %65 : vector<1x222xi1> to vector<8x222xi1>
    %67 = vector.broadcast %cst_32 : f32 to vector<8x222xf32>
    %68 = arith.select %66, %45, %67 : vector<8x222xi1>, vector<8x222xf32>
    %cst_33 = arith.constant dense<0.000000e+00> : vector<8xf32>
    %69 = vector.multi_reduction <add>, %68, %cst_33 [1] : vector<8x222xf32> to vector<8xf32>
    %70 = vector.shape_cast %69 : vector<8xf32> to vector<8x1xf32>
    %cst_34 = arith.constant 0.00510204071 : f32
    %71 = vector.broadcast %cst_34 : f32 to vector<8x1xf32>
    %72 = arith.mulf %70, %71 : vector<8x1xf32>
    %73 = arith.mulf %68, %68 : vector<8x222xf32>
    %cst_35 = arith.constant dense<0.000000e+00> : vector<8xf32>
    %74 = vector.multi_reduction <add>, %73, %cst_35 [1] : vector<8x222xf32> to vector<8xf32>
    %75 = vector.shape_cast %74 : vector<8xf32> to vector<8x1xf32>
    %cst_36 = arith.constant 0.00510204071 : f32
    %76 = vector.broadcast %cst_36 : f32 to vector<8x1xf32>
    %77 = arith.mulf %75, %76 : vector<8x1xf32>
    %78 = arith.mulf %72, %72 : vector<8x1xf32>
    %79 = arith.subf %77, %78 : vector<8x1xf32>
    %cst_37 = arith.constant 0.000000e+00 : f32
    %80 = vector.broadcast %cst_37 : f32 to vector<8x1xf32>
    %81 = arith.maximumf %79, %80 : vector<8x1xf32>
    %82 = vector.broadcast %72 : vector<8x1xf32> to vector<8x222xf32>
    %83 = arith.subf %45, %82 : vector<8x222xf32>
    %cst_38 = arith.constant 9.99999974E-6 : f32
    %84 = vector.broadcast %cst_38 : f32 to vector<8x1xf32>
    %85 = arith.addf %81, %84 : vector<8x1xf32>
    %86 = math.rsqrt %85 : vector<8x1xf32>
    %87 = vector.broadcast %86 : vector<8x1xf32> to vector<8x222xf32>
    %88 = arith.mulf %83, %87 : vector<8x222xf32>
    %cst_39 = arith.constant 0.000000e+00 : f32
    %89 = vector.broadcast %cst_39 : f32 to vector<8x222xf32>
    %90 = arith.cmpf oge, %88, %89 : vector<8x222xf32>
    %cst_40 = arith.constant 0.00999999977 : f32
    %91 = vector.broadcast %cst_40 : f32 to vector<8x222xf32>
    %92 = arith.mulf %91, %88 : vector<8x222xf32>
    %93 = arith.select %90, %88, %92 : vector<8x222xi1>, vector<8x222xf32>
    %94 = vector.extract_strided_slice %93 {offsets = [0, 0], sizes = [8, 14], strides = [1, 1]} : vector<8x222xf32> to vector<8x14xf32>
    %c0_41 = arith.constant 0 : index
    %c0_42 = arith.constant 0 : index
    %c0_43 = arith.constant 0 : index
    %c0_44 = arith.constant 0 : index
    %95 = vector.load %arg3[%c0_41, %c0_42, %c0_43, %c0_44] : memref<1x8x14x14xf32, #tpu.memory_space<vmem>>, vector<1x8x1x14xf32>
    %96 = vector.shape_cast %95 : vector<1x8x1x14xf32> to vector<8x14xf32>
    %97 = vector.shape_cast %94 : vector<8x14xf32> to vector<1x8x1x14xf32>
    tpu.vector_store %arg3[%c0_41, %c0_42, %c0_43, %c0_44], %97 {strides = array<i32>} : memref<1x8x14x14xf32, #tpu.memory_space<vmem>>, vector<1x8x1x14xf32>,
    %98 = vector.extract_strided_slice %93 {offsets = [0, 16], sizes = [8, 14], strides = [1, 1]} : vector<8x222xf32> to vector<8x14xf32>
    %c0_45 = arith.constant 0 : index
    %c0_46 = arith.constant 0 : index
    %c1_47 = arith.constant 1 : index
    %c0_48 = arith.constant 0 : index
    %99 = vector.load %arg3[%c0_45, %c0_46, %c1_47, %c0_48] : memref<1x8x14x14xf32, #tpu.memory_space<vmem>>, vector<1x8x1x14xf32>
    %100 = vector.shape_cast %99 : vector<1x8x1x14xf32> to vector<8x14xf32>
    %101 = vector.shape_cast %98 : vector<8x14xf32> to vector<1x8x1x14xf32>
    tpu.vector_store %arg3[%c0_45, %c0_46, %c1_47, %c0_48], %101 {strides = array<i32>} : memref<1x8x14x14xf32, #tpu.memory_space<vmem>>, vector<1x8x1x14xf32>,
    %102 = vector.extract_strided_slice %93 {offsets = [0, 32], sizes = [8, 14], strides = [1, 1]} : vector<8x222xf32> to vector<8x14xf32>
    %c0_49 = arith.constant 0 : index
    %c0_50 = arith.constant 0 : index
    %c2_51 = arith.constant 2 : index
    %c0_52 = arith.constant 0 : index
    %103 = vector.load %arg3[%c0_49, %c0_50, %c2_51, %c0_52] : memref<1x8x14x14xf32, #tpu.memory_space<vmem>>, vector<1x8x1x14xf32>
    %104 = vector.shape_cast %103 : vector<1x8x1x14xf32> to vector<8x14xf32>
    %105 = vector.shape_cast %102 : vector<8x14xf32> to vector<1x8x1x14xf32>
    tpu.vector_store %arg3[%c0_49, %c0_50, %c2_51, %c0_52], %105 {strides = array<i32>} : memref<1x8x14x14xf32, #tpu.memory_space<vmem>>, vector<1x8x1x14xf32>,
    %106 = vector.extract_strided_slice %93 {offsets = [0, 48], sizes = [8, 14], strides = [1, 1]} : vector<8x222xf32> to vector<8x14xf32>
    %c0_53 = arith.constant 0 : index
    %c0_54 = arith.constant 0 : index
    %c3_55 = arith.constant 3 : index
    %c0_56 = arith.constant 0 : index
    %107 = vector.load %arg3[%c0_53, %c0_54, %c3_55, %c0_56] : memref<1x8x14x14xf32, #tpu.memory_space<vmem>>, vector<1x8x1x14xf32>
    %108 = vector.shape_cast %107 : vector<1x8x1x14xf32> to vector<8x14xf32>
    %109 = vector.shape_cast %106 : vector<8x14xf32> to vector<1x8x1x14xf32>
    tpu.vector_store %arg3[%c0_53, %c0_54, %c3_55, %c0_56], %109 {strides = array<i32>} : memref<1x8x14x14xf32, #tpu.memory_space<vmem>>, vector<1x8x1x14xf32>,
    %110 = vector.extract_strided_slice %93 {offsets = [0, 64], sizes = [8, 14], strides = [1, 1]} : vector<8x222xf32> to vector<8x14xf32>
    %c0_57 = arith.constant 0 : index
    %c0_58 = arith.constant 0 : index
    %c4_59 = arith.constant 4 : index
    %c0_60 = arith.constant 0 : index
    %111 = vector.load %arg3[%c0_57, %c0_58, %c4_59, %c0_60] : memref<1x8x14x14xf32, #tpu.memory_space<vmem>>, vector<1x8x1x14xf32>
    %112 = vector.shape_cast %111 : vector<1x8x1x14xf32> to vector<8x14xf32>
    %113 = vector.shape_cast %110 : vector<8x14xf32> to vector<1x8x1x14xf32>
    tpu.vector_store %arg3[%c0_57, %c0_58, %c4_59, %c0_60], %113 {strides = array<i32>} : memref<1x8x14x14xf32, #tpu.memory_space<vmem>>, vector<1x8x1x14xf32>,
    %114 = vector.extract_strided_slice %93 {offsets = [0, 80], sizes = [8, 14], strides = [1, 1]} : vector<8x222xf32> to vector<8x14xf32>
    %c0_61 = arith.constant 0 : index
    %c0_62 = arith.constant 0 : index
    %c5_63 = arith.constant 5 : index
    %c0_64 = arith.constant 0 : index
    %115 = vector.load %arg3[%c0_61, %c0_62, %c5_63, %c0_64] : memref<1x8x14x14xf32, #tpu.memory_space<vmem>>, vector<1x8x1x14xf32>
    %116 = vector.shape_cast %115 : vector<1x8x1x14xf32> to vector<8x14xf32>
    %117 = vector.shape_cast %114 : vector<8x14xf32> to vector<1x8x1x14xf32>
    tpu.vector_store %arg3[%c0_61, %c0_62, %c5_63, %c0_64], %117 {strides = array<i32>} : memref<1x8x14x14xf32, #tpu.memory_space<vmem>>, vector<1x8x1x14xf32>,
    %118 = vector.extract_strided_slice %93 {offsets = [0, 96], sizes = [8, 14], strides = [1, 1]} : vector<8x222xf32> to vector<8x14xf32>
    %c0_65 = arith.constant 0 : index
    %c0_66 = arith.constant 0 : index
    %c6_67 = arith.constant 6 : index
    %c0_68 = arith.constant 0 : index
    %119 = vector.load %arg3[%c0_65, %c0_66, %c6_67, %c0_68] : memref<1x8x14x14xf32, #tpu.memory_space<vmem>>, vector<1x8x1x14xf32>
    %120 = vector.shape_cast %119 : vector<1x8x1x14xf32> to vector<8x14xf32>
    %121 = vector.shape_cast %118 : vector<8x14xf32> to vector<1x8x1x14xf32>
    tpu.vector_store %arg3[%c0_65, %c0_66, %c6_67, %c0_68], %121 {strides = array<i32>} : memref<1x8x14x14xf32, #tpu.memory_space<vmem>>, vector<1x8x1x14xf32>,
    %122 = vector.extract_strided_slice %93 {offsets = [0, 112], sizes = [8, 14], strides = [1, 1]} : vector<8x222xf32> to vector<8x14xf32>
    %c0_69 = arith.constant 0 : index
    %c0_70 = arith.constant 0 : index
    %c7_71 = arith.constant 7 : index
    %c0_72 = arith.constant 0 : index
    %123 = vector.load %arg3[%c0_69, %c0_70, %c7_71, %c0_72] : memref<1x8x14x14xf32, #tpu.memory_space<vmem>>, vector<1x8x1x14xf32>
    %124 = vector.shape_cast %123 : vector<1x8x1x14xf32> to vector<8x14xf32>
    %125 = vector.shape_cast %122 : vector<8x14xf32> to vector<1x8x1x14xf32>
    tpu.vector_store %arg3[%c0_69, %c0_70, %c7_71, %c0_72], %125 {strides = array<i32>} : memref<1x8x14x14xf32, #tpu.memory_space<vmem>>, vector<1x8x1x14xf32>,
    %126 = vector.extract_strided_slice %93 {offsets = [0, 128], sizes = [8, 14], strides = [1, 1]} : vector<8x222xf32> to vector<8x14xf32>
    %c0_73 = arith.constant 0 : index
    %c0_74 = arith.constant 0 : index
    %c8_75 = arith.constant 8 : index
    %c0_76 = arith.constant 0 : index
    %127 = vector.load %arg3[%c0_73, %c0_74, %c8_75, %c0_76] : memref<1x8x14x14xf32, #tpu.memory_space<vmem>>, vector<1x8x1x14xf32>
    %128 = vector.shape_cast %127 : vector<1x8x1x14xf32> to vector<8x14xf32>
    %129 = vector.shape_cast %126 : vector<8x14xf32> to vector<1x8x1x14xf32>
    tpu.vector_store %arg3[%c0_73, %c0_74, %c8_75, %c0_76], %129 {strides = array<i32>} : memref<1x8x14x14xf32, #tpu.memory_space<vmem>>, vector<1x8x1x14xf32>,
    %130 = vector.extract_strided_slice %93 {offsets = [0, 144], sizes = [8, 14], strides = [1, 1]} : vector<8x222xf32> to vector<8x14xf32>
    %c0_77 = arith.constant 0 : index
    %c0_78 = arith.constant 0 : index
    %c9 = arith.constant 9 : index
    %c0_79 = arith.constant 0 : index
    %131 = vector.load %arg3[%c0_77, %c0_78, %c9, %c0_79] : memref<1x8x14x14xf32, #tpu.memory_space<vmem>>, vector<1x8x1x14xf32>
    %132 = vector.shape_cast %131 : vector<1x8x1x14xf32> to vector<8x14xf32>
    %133 = vector.shape_cast %130 : vector<8x14xf32> to vector<1x8x1x14xf32>
    tpu.vector_store %arg3[%c0_77, %c0_78, %c9, %c0_79], %133 {strides = array<i32>} : memref<1x8x14x14xf32, #tpu.memory_space<vmem>>, vector<1x8x1x14xf32>,
    %134 = vector.extract_strided_slice %93 {offsets = [0, 160], sizes = [8, 14], strides = [1, 1]} : vector<8x222xf32> to vector<8x14xf32>
    %c0_80 = arith.constant 0 : index
    %c0_81 = arith.constant 0 : index
    %c10 = arith.constant 10 : index
    %c0_82 = arith.constant 0 : index
    %135 = vector.load %arg3[%c0_80, %c0_81, %c10, %c0_82] : memref<1x8x14x14xf32, #tpu.memory_space<vmem>>, vector<1x8x1x14xf32>
    %136 = vector.shape_cast %135 : vector<1x8x1x14xf32> to vector<8x14xf32>
    %137 = vector.shape_cast %134 : vector<8x14xf32> to vector<1x8x1x14xf32>
    tpu.vector_store %arg3[%c0_80, %c0_81, %c10, %c0_82], %137 {strides = array<i32>} : memref<1x8x14x14xf32, #tpu.memory_space<vmem>>, vector<1x8x1x14xf32>,
    %138 = vector.extract_strided_slice %93 {offsets = [0, 176], sizes = [8, 14], strides = [1, 1]} : vector<8x222xf32> to vector<8x14xf32>
    %c0_83 = arith.constant 0 : index
    %c0_84 = arith.constant 0 : index
    %c11 = arith.constant 11 : index
    %c0_85 = arith.constant 0 : index
    %139 = vector.load %arg3[%c0_83, %c0_84, %c11, %c0_85] : memref<1x8x14x14xf32, #tpu.memory_space<vmem>>, vector<1x8x1x14xf32>
    %140 = vector.shape_cast %139 : vector<1x8x1x14xf32> to vector<8x14xf32>
    %141 = vector.shape_cast %138 : vector<8x14xf32> to vector<1x8x1x14xf32>
    tpu.vector_store %arg3[%c0_83, %c0_84, %c11, %c0_85], %141 {strides = array<i32>} : memref<1x8x14x14xf32, #tpu.memory_space<vmem>>, vector<1x8x1x14xf32>,
    %142 = vector.extract_strided_slice %93 {offsets = [0, 192], sizes = [8, 14], strides = [1, 1]} : vector<8x222xf32> to vector<8x14xf32>
    %c0_86 = arith.constant 0 : index
    %c0_87 = arith.constant 0 : index
    %c12 = arith.constant 12 : index
    %c0_88 = arith.constant 0 : index
    %143 = vector.load %arg3[%c0_86, %c0_87, %c12, %c0_88] : memref<1x8x14x14xf32, #tpu.memory_space<vmem>>, vector<1x8x1x14xf32>
    %144 = vector.shape_cast %143 : vector<1x8x1x14xf32> to vector<8x14xf32>
    %145 = vector.shape_cast %142 : vector<8x14xf32> to vector<1x8x1x14xf32>
    tpu.vector_store %arg3[%c0_86, %c0_87, %c12, %c0_88], %145 {strides = array<i32>} : memref<1x8x14x14xf32, #tpu.memory_space<vmem>>, vector<1x8x1x14xf32>,
    %146 = vector.extract_strided_slice %93 {offsets = [0, 208], sizes = [8, 14], strides = [1, 1]} : vector<8x222xf32> to vector<8x14xf32>
    %c0_89 = arith.constant 0 : index
    %c0_90 = arith.constant 0 : index
    %c13 = arith.constant 13 : index
    %c0_91 = arith.constant 0 : index
    %147 = vector.load %arg3[%c0_89, %c0_90, %c13, %c0_91] : memref<1x8x14x14xf32, #tpu.memory_space<vmem>>, vector<1x8x1x14xf32>
    %148 = vector.shape_cast %147 : vector<1x8x1x14xf32> to vector<8x14xf32>
    %149 = vector.shape_cast %146 : vector<8x14xf32> to vector<1x8x1x14xf32>
    tpu.vector_store %arg3[%c0_89, %c0_90, %c13, %c0_91], %149 {strides = array<i32>} : memref<1x8x14x14xf32, #tpu.memory_space<vmem>>, vector<1x8x1x14xf32>,
    return
  }
  func.func @transform_0(%arg0: i32) -> (i32, i32, i32) {
    %c0_i32 = arith.constant 0 : i32
    %c0_i32_0 = arith.constant 0 : i32
    %c0_i32_1 = arith.constant 0 : i32
    return %arg0, %c0_i32, %c0_i32_0 : i32, i32, i32
  }
  func.func @transform_1(%arg0: i32) -> (i32, i32, i32) {
    %c0_i32 = arith.constant 0 : i32
    %c0_i32_0 = arith.constant 0 : i32
    %c0_i32_1 = arith.constant 0 : i32
    %c0_i32_2 = arith.constant 0 : i32
    return %c0_i32, %c0_i32_0, %c0_i32_1 : i32, i32, i32
  }
  func.func @transform_2(%arg0: i32) -> (i32, i32, i32, i32) {
    %c0_i32 = arith.constant 0 : i32
    %c0_i32_0 = arith.constant 0 : i32
    %c0_i32_1 = arith.constant 0 : i32
    %c0_i32_2 = arith.constant 0 : i32
    return %arg0, %c0_i32, %c0_i32_0, %c0_i32_1 : i32, i32, i32, i32
  }
}

</mosaic_0001>

<llo_original>
// kernel: tpu_custom_call.1
$region0: #{tpu_custom_call.1}
  #allocation0 [shape = 'u32[]', space=smem, size = 0x4, offset = 0x4, fixed_abs, tag = 'smem constant byte address 0x4 - core index']
  #allocation1 [shape = 'u32[144,128]{1,0:T(1,128)}', space=vmem, size = 0x12000, scoped, tag = 'internal scratch']
  %s0 = inlined_call_operand.vmem [shape: f32[2,4,256], index: 0, kind: input, shape index: {}]
  %s1 = inlined_call_operand.vmem [shape: f32[9,8,4], index: 1, kind: input, shape index: {}]
  %s2 = inlined_call_operand.vmem [shape: f32[2,8,14,14], index: 2, kind: output, shape index: {}]
  %s3 = sld [smem:[#allocation0]]
  $region41: #{tpu_custom_call.1} parent=0
    _
  %s5 = ssub.s32 1, %s3
  %s6 = scalar_select 0, %s5, %s3
  loop: start=0, step=1, limit=4
  $region2: #{tpu_custom_call.1} parent=0 // loop_pre_header
    _
  $region3: #{tpu_custom_call.1} parent=0 // loop_header
    %s8 = sphi 0, %s12
    %p9 = scmp.ge.s32.totalorder %s8, 4
    %s18 = sphi 0, %s20
    %s21 = sphi 0, %s18
    %s22 = sphi 0, %s21
    %s38 = sphi 0, %s22
    %s42 = sphi 0, %s42
    %s44 = sphi 0, %s42
    %s45 = sphi 0, %s44
    %s59 = sphi 0, %s45
    %s65 = sphi 0, %s67
    %s68 = sphi 0, %s65
    %s69 = sphi 0, %s68
    %s85 = sphi 0, %s69
  $region4: #{tpu_custom_call.1} parent=0 // loop_header_branch
    %11 = sbr.rel (%p9) target = $region8
  $region5: #{tpu_custom_call.1} parent=0 // loop_body
    %s13 = ssub.s32 %s8, 1
    %s14 = ssub.s32 %s8, 2
    %s15 = sadd.s32 %s8, 1
    %s16 = ssub.s32 %s8, %s15
    %p17 = scmp.eq.s32.totalorder %s16, 0
    %s19 = sadd.s32 %s18, 1
    %s20 = scalar_select %p17, %s18, %s19
    %p23 = pneg %p17
    %p24 = scmp.eq.s32.totalorder %s8, 1
    %p25 = por %p23, %p24
    %p26 = scmp.ne.s32.totalorder %s18, %s21
    %p27 = scmp.eq.s32.totalorder %s8, 0
    %p28 = por %p26, %p27
    %p29 = scmp.ne.s32.totalorder %s18, %s21
    %p30 = scmp.eq.s32.totalorder %s13, 1
    %p31 = por %p29, %p30
    %p32 = scmp.ne.s32.totalorder %s21, %s22
    %p33 = scmp.eq.s32.totalorder %s13, 0
    %p34 = por %p32, %p33
    %p35 = scmp.ne.s32.totalorder %s21, %s22
    %p36 = scmp.eq.s32.totalorder %s14, 1
    %p37 = por %p35, %p36
    %p39 = scmp.ne.s32.totalorder %s22, %s38
    %p40 = scmp.eq.s32.totalorder %s14, 0
    %p41 = por %p39, %p40
    %s43 = sadd.s32 %s42, 1
    %p46 = scmp.eq.s32.totalorder %s8, 1
    %p47 = scmp.ne.s32.totalorder %s42, %s44
    %p48 = scmp.eq.s32.totalorder %s8, 0
    %p49 = por %p47, %p48
    %p50 = scmp.ne.s32.totalorder %s42, %s44
    %p51 = scmp.eq.s32.totalorder %s13, 1
    %p52 = por %p50, %p51
    %p53 = scmp.ne.s32.totalorder %s44, %s45
    %p54 = scmp.eq.s32.totalorder %s13, 0
    %p55 = por %p53, %p54
    %p56 = scmp.ne.s32.totalorder %s44, %s45
    %p57 = scmp.eq.s32.totalorder %s14, 1
    %p58 = por %p56, %p57
    %p60 = scmp.ne.s32.totalorder %s45, %s59
    %p61 = scmp.eq.s32.totalorder %s14, 0
    %p62 = por %p60, %p61
    %s63 = ssub.s32 %s8, %s15
    %p64 = scmp.eq.s32.totalorder %s63, 0
    %s66 = sadd.s32 %s65, 1
    %s67 = scalar_select %p64, %s65, %s66
    %p70 = pneg %p64
    %p71 = scmp.eq.s32.totalorder %s8, 1
    %p72 = por %p70, %p71
    %p73 = scmp.ne.s32.totalorder %s65, %s68
    %p74 = scmp.eq.s32.totalorder %s8, 0
    %p75 = por %p73, %p74
    %p76 = scmp.ne.s32.totalorder %s65, %s68
    %p77 = scmp.eq.s32.totalorder %s13, 1
    %p78 = por %p76, %p77
    %p79 = scmp.ne.s32.totalorder %s68, %s69
    %p80 = scmp.eq.s32.totalorder %s13, 0
    %p81 = por %p79, %p80
    %p82 = scmp.ne.s32.totalorder %s68, %s69
    %p83 = scmp.eq.s32.totalorder %s14, 1
    %p84 = por %p82, %p83
    %p86 = scmp.ne.s32.totalorder %s69, %s85
    %p87 = scmp.eq.s32.totalorder %s14, 0
    %p88 = por %p86, %p87
    %p89 = scmp.le.s32.totalorder 1, %s8
    %p90 = scmp.lt.s32.totalorder %s8, 3
    %p91 = pnand %p89, %p90
    %p92 = pneg %p91
    // Predicated region
    $region9: #{tpu_custom_call.1} parent=5 // pred_check
      _
    $region10: #{tpu_custom_call.1} parent=5 // pred_check_branch
      %94 = sbr.rel (%p91) target = $region12
    $region11: #{tpu_custom_call.1} parent=5 // pred_region
      %s95 = ssub.s32 %s8, 1
      // Predicated region
      $region13: #{tpu_custom_call.1} parent=11 // pred_check
        %p96 = pneg %p55
      $region14: #{tpu_custom_call.1} parent=11 // pred_check_branch
        %98 = sbr.rel (%p96) target = $region16
      $region15: #{tpu_custom_call.1} parent=11 // pred_region
        _
      $region16: #{tpu_custom_call.1} parent=11 // pred_fallthru
        _
    $region12: #{tpu_custom_call.1} parent=5 // pred_fallthru
      _
    %p99 = scmp.lt.s32.totalorder %s8, 2
    // Predicated region
    $region17: #{tpu_custom_call.1} parent=5 // pred_check
      %p100 = pneg %p99
    $region18: #{tpu_custom_call.1} parent=5 // pred_check_branch
      %102 = sbr.rel (%p100) target = $region20
    $region19: #{tpu_custom_call.1} parent=5 // pred_region
      // Predicated region
      $region21: #{tpu_custom_call.1} parent=19 // pred_check
        %p103 = pneg %p28
      $region22: #{tpu_custom_call.1} parent=19 // pred_check_branch
        %105 = sbr.rel (%p103) target = $region24
      $region23: #{tpu_custom_call.1} parent=19 // pred_region
        %p106 = scmp.lt.s32.totalorder %s8, 1
        %s107 = scalar_select %p106, %s8, 1
        %s108 = smul.addr %s107, 2
        %s109 = smul.addr %s108, 4
        %s110 = scalar_lea.vmem %s0, %s109
      $region24: #{tpu_custom_call.1} parent=19 // pred_fallthru
        _
    $region20: #{tpu_custom_call.1} parent=5 // pred_fallthru
      _
    %p111 = scmp.le.s32.totalorder 1, %s8
    %p112 = scmp.lt.s32.totalorder %s8, 3
    %p113 = pnand %p111, %p112
    %p114 = pneg %p113
    // Predicated region
    $region25: #{tpu_custom_call.1} parent=5 // pred_check
      _
    $region26: #{tpu_custom_call.1} parent=5 // pred_check_branch
      %116 = sbr.rel (%p113) target = $region28
    $region27: #{tpu_custom_call.1} parent=5 // pred_region
      %s117 = ssub.s32 %s8, 1
      %p118 = scmp.lt.s32.totalorder %s13, 1
      %s119 = scalar_select %p118, %s13, 1
      %s120 = smul.addr %s119, 2
      %s121 = smul.addr %s120, 4
      %s122 = scalar_lea.vmem %s0, %s121
      %p123 = pneg %p34
      %p124 = pneg %p31
      %p125 = pneg %p55
      %p126 = pneg %p52
      %p127 = pneg %p81
      %p128 = pneg %p78
      %p129 = scmp.lt.s32.totalorder %s13, 1
      %s130 = scalar_select %p129, %s13, 1
      %s131 = smul.addr %s130, 16
      %s132 = smul.addr %s131, 8
      %s133 = scalar_lea.vmem %s2, %s132
      %p134 = scmp.lt.s32.totalorder %s13, 1
      %s135 = scalar_select %p134, %s13, 1
      %s136 = smul.addr %s135, 2
      %s137 = smul.addr %s136, 4
      %s138 = scalar_lea.vmem %s0, %s137
      %p139 = scmp.lt.s32.totalorder %s13, 1
      %s140 = scalar_select %p139, %s13, 1
      %s141 = smul.addr %s140, 16
      %s142 = smul.addr %s141, 8
      %s143 = scalar_lea.vmem %s2, %s142
      %v144 = vld [vmem:[%s138] sm:$0xff]
      %v145 = vld [vmem:[%s1] sm:$0xff]
      %s146 = scalar_lea.vmem %s1, 8
      %v147 = vld [vmem:[%s146] sm:$0xff]
      %v149 = vcombine.high %v144, %v144
      %150 = vrot.lane.b32.xlu0 %v144, 127
      %v151 = vpop.permute.xlu0 %150
      %152 = vrot.lane.b32.xlu0 %v149, 127
      %v153 = vpop.permute.xlu0 %152
      %vm154 = vcmask 1039360
      %v155 = vsel %vm154, %v151, %v153
      %vm156 = vcmask 31744
      %v158 = vsel %vm156, %v147, 0
      %vm160 = vcmask 1043456
      %v161 = vsel %vm160, %v155, 0
      %v163 = vsel %vm160, %v153, 0
      %165 = vmatprep.subr.mxu0 %v163
      %166 = vmatpush1.msra.mxu0 %v161
      %167 = vmatprep.subr.mxu0 0.0
      %168 = vmatpush1.msra.mxu0 0.0
      %169 = vmatprep.subr.mxu0 0.0
      %170 = vmatpush1.msra.mxu0 0.0
      %171 = vmatprep.subr.mxu0 0.0
      %172 = vmatpush1.msra.mxu0 0.0
      %173 = vmatprep.subr.mxu0 0.0
      %174 = vmatpush1.msra.mxu0 0.0
      %175 = vmatprep.subr.mxu0 0.0
      %176 = vmatpush1.msra.mxu0 0.0
      %177 = vmatprep.subr.mxu0 0.0
      %178 = vmatpush1.msra.mxu0 0.0
      %179 = vmatprep.subr.mxu0 0.0
      %180 = vmatpush1.msra.mxu0 0.0
      %181 = vmatprep.subr.mxu0 0.0
      %182 = vmatpush1.msra.mxu0 0.0
      %183 = vmatprep.subr.mxu0 0.0
      %184 = vmatpush1.msra.mxu0 0.0
      %185 = vmatprep.subr.mxu0 0.0
      %186 = vmatpush1.msra.mxu0 0.0
      %187 = vmatprep.subr.mxu0 0.0
      %188 = vmatpush1.msra.mxu0 0.0
      %189 = vmatprep.subr.mxu0 0.0
      %190 = vmatpush1.msra.mxu0 0.0
      %191 = vmatprep.subr.mxu0 0.0
      %192 = vmatpush1.msra.mxu0 0.0
      %193 = vmatprep.subr.mxu0 0.0
      %194 = vmatpush1.msra.mxu0 0.0
      %195 = vmatprep.subr.mxu0 0.0
      %196 = vmatpush1.msra.mxu0 0.0
      %197 = vmatprep.subr.mxu0 0.0
      %198 = vmatpush1.msra.mxu0 0.0
      %199 = vmatprep.subr.mxu0 0.0
      %200 = vmatpush1.msra.mxu0 0.0
      %201 = vmatprep.subr.mxu0 0.0
      %202 = vmatpush1.msra.mxu0 0.0
      %203 = vmatprep.subr.mxu0 0.0
      %204 = vmatpush1.msra.mxu0 0.0
      %205 = vmatprep.subr.mxu0 0.0
      %206 = vmatpush1.msra.mxu0 0.0
      %207 = vmatprep.subr.mxu0 0.0
      %208 = vmatpush1.msra.mxu0 0.0
      %209 = vmatprep.subr.mxu0 0.0
      %210 = vmatpush1.msra.mxu0 0.0
      %211 = vmatprep.subr.mxu0 0.0
      %212 = vmatpush1.msra.mxu0 0.0
      %213 = vmatprep.subr.mxu0 0.0
      %214 = vmatpush1.msra.mxu0 0.0
      %215 = vmatprep.subr.mxu0 0.0
      %216 = vmatpush1.msra.mxu0 0.0
      %217 = vmatprep.subr.mxu0 0.0
      %218 = vmatpush1.msra.mxu0 0.0
      %219 = vmatprep.subr.mxu0 0.0
      %220 = vmatpush1.msra.mxu0 0.0
      %221 = vmatprep.subr.mxu0 0.0
      %222 = vmatpush1.msra.mxu0 0.0
      %223 = vmatprep.subr.mxu0 0.0
      %224 = vmatpush1.msra.mxu0 0.0
      %225 = vmatprep.subr.mxu0 0.0
      %226 = vmatpush1.msra.mxu0 0.0
      %227 = vmatprep.subr.mxu0 0.0
      %228 = vmatpush1.msra.mxu0 0.0
      %229 = vmatprep.mubr.f32.mxu0 0.0
      %230 = vmatmul.mubr.f32.gmra.mrb[0].mxu0 %v158
      %v231 = vpop.f32.mrb[0].mxu0
      %v232 = vadd.f32 0.0, %v231
      %v233 = vpop.f32.mrb[0].mxu0
      %v234 = vadd.f32 0.0, %v233
      %235 = vdwg.mxu0
      %v237 = vsel %vm156, %v145, 0
      %v239 = vsel %vm160, %v144, 0
      %v241 = vsel %vm160, %v149, 0
      %243 = vmatprep.subr.mxu0 %v241
      %244 = vmatpush1.msra.mxu0 %v239
      %245 = vmatprep.subr.mxu0 0.0
      %246 = vmatpush1.msra.mxu0 0.0
      %247 = vmatprep.subr.mxu0 0.0
      %248 = vmatpush1.msra.mxu0 0.0
      %249 = vmatprep.subr.mxu0 0.0
      %250 = vmatpush1.msra.mxu0 0.0
      %251 = vmatprep.subr.mxu0 0.0
      %252 = vmatpush1.msra.mxu0 0.0
      %253 = vmatprep.subr.mxu0 0.0
      %254 = vmatpush1.msra.mxu0 0.0
      %255 = vmatprep.subr.mxu0 0.0
      %256 = vmatpush1.msra.mxu0 0.0
      %257 = vmatprep.subr.mxu0 0.0
      %258 = vmatpush1.msra.mxu0 0.0
      %259 = vmatprep.subr.mxu0 0.0
      %260 = vmatpush1.msra.mxu0 0.0
      %261 = vmatprep.subr.mxu0 0.0
      %262 = vmatpush1.msra.mxu0 0.0
      %263 = vmatprep.subr.mxu0 0.0
      %264 = vmatpush1.msra.mxu0 0.0
      %265 = vmatprep.subr.mxu0 0.0
      %266 = vmatpush1.msra.mxu0 0.0
      %267 = vmatprep.subr.mxu0 0.0
      %268 = vmatpush1.msra.mxu0 0.0
      %269 = vmatprep.subr.mxu0 0.0
      %270 = vmatpush1.msra.mxu0 0.0
      %271 = vmatprep.subr.mxu0 0.0
      %272 = vmatpush1.msra.mxu0 0.0
      %273 = vmatprep.subr.mxu0 0.0
      %274 = vmatpush1.msra.mxu0 0.0
      %275 = vmatprep.subr.mxu0 0.0
      %276 = vmatpush1.msra.mxu0 0.0
      %277 = vmatprep.subr.mxu0 0.0
      %278 = vmatpush1.msra.mxu0 0.0
      %279 = vmatprep.subr.mxu0 0.0
      %280 = vmatpush1.msra.mxu0 0.0
      %281 = vmatprep.subr.mxu0 0.0
      %282 = vmatpush1.msra.mxu0 0.0
      %283 = vmatprep.subr.mxu0 0.0
      %284 = vmatpush1.msra.mxu0 0.0
      %285 = vmatprep.subr.mxu0 0.0
      %286 = vmatpush1.msra.mxu0 0.0
      %287 = vmatprep.subr.mxu0 0.0
      %288 = vmatpush1.msra.mxu0 0.0
      %289 = vmatprep.subr.mxu0 0.0
      %290 = vmatpush1.msra.mxu0 0.0
      %291 = vmatprep.subr.mxu0 0.0
      %292 = vmatpush1.msra.mxu0 0.0
      %293 = vmatprep.subr.mxu0 0.0
      %294 = vmatpush1.msra.mxu0 0.0
      %295 = vmatprep.subr.mxu0 0.0
      %296 = vmatpush1.msra.mxu0 0.0
      %297 = vmatprep.subr.mxu0 0.0
      %298 = vmatpush1.msra.mxu0 0.0
      %299 = vmatprep.subr.mxu0 0.0
      %300 = vmatpush1.msra.mxu0 0.0
      %301 = vmatprep.subr.mxu0 0.0
      %302 = vmatpush1.msra.mxu0 0.0
      %303 = vmatprep.subr.mxu0 0.0
      %304 = vmatpush1.msra.mxu0 0.0
      %305 = vmatprep.subr.mxu0 0.0
      %306 = vmatpush1.msra.mxu0 0.0
      %307 = vmatprep.mubr.f32.mxu0 0.0
      %308 = vmatmul.mubr.f32.gmra.mrb[0].mxu0 %v237
      %v309 = vpop.f32.mrb[0].mxu0
      %v310 = vadd.f32 %v232, %v309
      %v311 = vpop.f32.mrb[0].mxu0
      %v312 = vadd.f32 %v234, %v311
      %313 = vdwg.mxu0
      %s314 = scalar_lea.vmem %s1, 16
      %v315 = vld [vmem:[%s314] sm:$0xff]
      %316 = vrot.lane.b32.xlu0 %v144, 126
      %v317 = vpop.permute.xlu0 %316
      %318 = vrot.lane.b32.xlu0 %v149, 126
      %v319 = vpop.permute.xlu0 %318
      %vm320 = vcmask 1031168
      %v321 = vsel %vm320, %v317, %v319
      %v323 = vsel %vm156, %v315, 0
      %v325 = vsel %vm160, %v321, 0
      %v327 = vsel %vm160, %v319, 0
      %329 = vmatprep.subr.mxu0 %v327
      %330 = vmatpush1.msra.mxu0 %v325
      %331 = vmatprep.subr.mxu0 0.0
      %332 = vmatpush1.msra.mxu0 0.0
      %333 = vmatprep.subr.mxu0 0.0
      %334 = vmatpush1.msra.mxu0 0.0
      %335 = vmatprep.subr.mxu0 0.0
      %336 = vmatpush1.msra.mxu0 0.0
      %337 = vmatprep.subr.mxu0 0.0
      %338 = vmatpush1.msra.mxu0 0.0
      %339 = vmatprep.subr.mxu0 0.0
      %340 = vmatpush1.msra.mxu0 0.0
      %341 = vmatprep.subr.mxu0 0.0
      %342 = vmatpush1.msra.mxu0 0.0
      %343 = vmatprep.subr.mxu0 0.0
      %344 = vmatpush1.msra.mxu0 0.0
      %345 = vmatprep.subr.mxu0 0.0
      %346 = vmatpush1.msra.mxu0 0.0
      %347 = vmatprep.subr.mxu0 0.0
      %348 = vmatpush1.msra.mxu0 0.0
      %349 = vmatprep.subr.mxu0 0.0
      %350 = vmatpush1.msra.mxu0 0.0
      %351 = vmatprep.subr.mxu0 0.0
      %352 = vmatpush1.msra.mxu0 0.0
      %353 = vmatprep.subr.mxu0 0.0
      %354 = vmatpush1.msra.mxu0 0.0
      %355 = vmatprep.subr.mxu0 0.0
      %356 = vmatpush1.msra.mxu0 0.0
      %357 = vmatprep.subr.mxu0 0.0
      %358 = vmatpush1.msra.mxu0 0.0
      %359 = vmatprep.subr.mxu0 0.0
      %360 = vmatpush1.msra.mxu0 0.0
      %361 = vmatprep.subr.mxu0 0.0
      %362 = vmatpush1.msra.mxu0 0.0
      %363 = vmatprep.subr.mxu0 0.0
      %364 = vmatpush1.msra.mxu0 0.0
      %365 = vmatprep.subr.mxu0 0.0
      %366 = vmatpush1.msra.mxu0 0.0
      %367 = vmatprep.subr.mxu0 0.0
      %368 = vmatpush1.msra.mxu0 0.0
      %369 = vmatprep.subr.mxu0 0.0
      %370 = vmatpush1.msra.mxu0 0.0
      %371 = vmatprep.subr.mxu0 0.0
      %372 = vmatpush1.msra.mxu0 0.0
      %373 = vmatprep.subr.mxu0 0.0
      %374 = vmatpush1.msra.mxu0 0.0
      %375 = vmatprep.subr.mxu0 0.0
      %376 = vmatpush1.msra.mxu0 0.0
      %377 = vmatprep.subr.mxu0 0.0
      %378 = vmatpush1.msra.mxu0 0.0
      %379 = vmatprep.subr.mxu0 0.0
      %380 = vmatpush1.msra.mxu0 0.0
      %381 = vmatprep.subr.mxu0 0.0
      %382 = vmatpush1.msra.mxu0 0.0
      %383 = vmatprep.subr.mxu0 0.0
      %384 = vmatpush1.msra.mxu0 0.0
      %385 = vmatprep.subr.mxu0 0.0
      %386 = vmatpush1.msra.mxu0 0.0
      %387 = vmatprep.subr.mxu0 0.0
      %388 = vmatpush1.msra.mxu0 0.0
      %389 = vmatprep.subr.mxu0 0.0
      %390 = vmatpush1.msra.mxu0 0.0
      %391 = vmatprep.subr.mxu0 0.0
      %392 = vmatpush1.msra.mxu0 0.0
      %393 = vmatprep.mubr.f32.mxu0 0.0
      %394 = vmatmul.mubr.f32.gmra.mrb[0].mxu0 %v323
      %v395 = vpop.f32.mrb[0].mxu0
      %v396 = vadd.f32 0.0, %v395
      %v397 = vpop.f32.mrb[0].mxu0
      %v398 = vadd.f32 0.0, %v397
      %399 = vdwg.mxu0
      %v400 = vadd.f32 %v310, %v396
      %v401 = vadd.f32 %v312, %v398
      %s402 = scalar_lea.vmem %s1, 24
      %v403 = vld [vmem:[%s402] sm:$0xff]
      %404 = vrot.lane.b32.xlu0 %v144, 112
      %v405 = vpop.permute.xlu0 %404
      %406 = vrot.lane.b32.xlu0 %v149, 112
      %v407 = vpop.permute.xlu0 %406
      %vm408 = vcmask 916480
      %v409 = vsel %vm408, %v405, %v407
      %v411 = vsel %vm156, %v403, 0
      %v413 = vsel %vm160, %v409, 0
      %v415 = vsel %vm160, %v407, 0
      %417 = vmatprep.subr.mxu0 %v415
      %418 = vmatpush1.msra.mxu0 %v413
      %419 = vmatprep.subr.mxu0 0.0
      %420 = vmatpush1.msra.mxu0 0.0
      %421 = vmatprep.subr.mxu0 0.0
      %422 = vmatpush1.msra.mxu0 0.0
      %423 = vmatprep.subr.mxu0 0.0
      %424 = vmatpush1.msra.mxu0 0.0
      %425 = vmatprep.subr.mxu0 0.0
      %426 = vmatpush1.msra.mxu0 0.0
      %427 = vmatprep.subr.mxu0 0.0
      %428 = vmatpush1.msra.mxu0 0.0
      %429 = vmatprep.subr.mxu0 0.0
      %430 = vmatpush1.msra.mxu0 0.0
      %431 = vmatprep.subr.mxu0 0.0
      %432 = vmatpush1.msra.mxu0 0.0
      %433 = vmatprep.subr.mxu0 0.0
      %434 = vmatpush1.msra.mxu0 0.0
      %435 = vmatprep.subr.mxu0 0.0
      %436 = vmatpush1.msra.mxu0 0.0
      %437 = vmatprep.subr.mxu0 0.0
      %438 = vmatpush1.msra.mxu0 0.0
      %439 = vmatprep.subr.mxu0 0.0
      %440 = vmatpush1.msra.mxu0 0.0
      %441 = vmatprep.subr.mxu0 0.0
      %442 = vmatpush1.msra.mxu0 0.0
      %443 = vmatprep.subr.mxu0 0.0
      %444 = vmatpush1.msra.mxu0 0.0
      %445 = vmatprep.subr.mxu0 0.0
      %446 = vmatpush1.msra.mxu0 0.0
      %447 = vmatprep.subr.mxu0 0.0
      %448 = vmatpush1.msra.mxu0 0.0
      %449 = vmatprep.subr.mxu0 0.0
      %450 = vmatpush1.msra.mxu0 0.0
      %451 = vmatprep.subr.mxu0 0.0
      %452 = vmatpush1.msra.mxu0 0.0
      %453 = vmatprep.subr.mxu0 0.0
      %454 = vmatpush1.msra.mxu0 0.0
      %455 = vmatprep.subr.mxu0 0.0
      %456 = vmatpush1.msra.mxu0 0.0
      %457 = vmatprep.subr.mxu0 0.0
      %458 = vmatpush1.msra.mxu0 0.0
      %459 = vmatprep.subr.mxu0 0.0
      %460 = vmatpush1.msra.mxu0 0.0
      %461 = vmatprep.subr.mxu0 0.0
      %462 = vmatpush1.msra.mxu0 0.0
      %463 = vmatprep.subr.mxu0 0.0
      %464 = vmatpush1.msra.mxu0 0.0
      %465 = vmatprep.subr.mxu0 0.0
      %466 = vmatpush1.msra.mxu0 0.0
      %467 = vmatprep.subr.mxu0 0.0
      %468 = vmatpush1.msra.mxu0 0.0
      %469 = vmatprep.subr.mxu0 0.0
      %470 = vmatpush1.msra.mxu0 0.0
      %471 = vmatprep.subr.mxu0 0.0
      %472 = vmatpush1.msra.mxu0 0.0
      %473 = vmatprep.subr.mxu0 0.0
      %474 = vmatpush1.msra.mxu0 0.0
      %475 = vmatprep.subr.mxu0 0.0
      %476 = vmatpush1.msra.mxu0 0.0
      %477 = vmatprep.subr.mxu0 0.0
      %478 = vmatpush1.msra.mxu0 0.0
      %479 = vmatprep.subr.mxu0 0.0
      %480 = vmatpush1.msra.mxu0 0.0
      %481 = vmatprep.mubr.f32.mxu0 0.0
      %482 = vmatmul.mubr.f32.gmra.mrb[0].mxu0 %v411
      %v483 = vpop.f32.mrb[0].mxu0
      %v484 = vadd.f32 0.0, %v483
      %v485 = vpop.f32.mrb[0].mxu0
      %v486 = vadd.f32 0.0, %v485
      %487 = vdwg.mxu0
      %v488 = vadd.f32 %v400, %v484
      %v489 = vadd.f32 %v401, %v486
      %s490 = scalar_lea.vmem %s1, 32
      %v491 = vld [vmem:[%s490] sm:$0xff]
      %492 = vrot.lane.b32.xlu0 %v144, 111
      %v493 = vpop.permute.xlu0 %492
      %494 = vrot.lane.b32.xlu0 %v149, 111
      %v495 = vpop.permute.xlu0 %494
      %vm496 = vcmask 908288
      %v497 = vsel %vm496, %v493, %v495
      %v499 = vsel %vm156, %v491, 0
      %v501 = vsel %vm160, %v497, 0
      %v503 = vsel %vm160, %v495, 0
      %505 = vmatprep.subr.mxu0 %v503
      %506 = vmatpush1.msra.mxu0 %v501
      %507 = vmatprep.subr.mxu0 0.0
      %508 = vmatpush1.msra.mxu0 0.0
      %509 = vmatprep.subr.mxu0 0.0
      %510 = vmatpush1.msra.mxu0 0.0
      %511 = vmatprep.subr.mxu0 0.0
      %512 = vmatpush1.msra.mxu0 0.0
      %513 = vmatprep.subr.mxu0 0.0
      %514 = vmatpush1.msra.mxu0 0.0
      %515 = vmatprep.subr.mxu0 0.0
      %516 = vmatpush1.msra.mxu0 0.0
      %517 = vmatprep.subr.mxu0 0.0
      %518 = vmatpush1.msra.mxu0 0.0
      %519 = vmatprep.subr.mxu0 0.0
      %520 = vmatpush1.msra.mxu0 0.0
      %521 = vmatprep.subr.mxu0 0.0
      %522 = vmatpush1.msra.mxu0 0.0
      %523 = vmatprep.subr.mxu0 0.0
      %524 = vmatpush1.msra.mxu0 0.0
      %525 = vmatprep.subr.mxu0 0.0
      %526 = vmatpush1.msra.mxu0 0.0
      %527 = vmatprep.subr.mxu0 0.0
      %528 = vmatpush1.msra.mxu0 0.0
      %529 = vmatprep.subr.mxu0 0.0
      %530 = vmatpush1.msra.mxu0 0.0
      %531 = vmatprep.subr.mxu0 0.0
      %532 = vmatpush1.msra.mxu0 0.0
      %533 = vmatprep.subr.mxu0 0.0
      %534 = vmatpush1.msra.mxu0 0.0
      %535 = vmatprep.subr.mxu0 0.0
      %536 = vmatpush1.msra.mxu0 0.0
      %537 = vmatprep.subr.mxu0 0.0
      %538 = vmatpush1.msra.mxu0 0.0
      %539 = vmatprep.subr.mxu0 0.0
      %540 = vmatpush1.msra.mxu0 0.0
      %541 = vmatprep.subr.mxu0 0.0
      %542 = vmatpush1.msra.mxu0 0.0
      %543 = vmatprep.subr.mxu0 0.0
      %544 = vmatpush1.msra.mxu0 0.0
      %545 = vmatprep.subr.mxu0 0.0
      %546 = vmatpush1.msra.mxu0 0.0
      %547 = vmatprep.subr.mxu0 0.0
      %548 = vmatpush1.msra.mxu0 0.0
      %549 = vmatprep.subr.mxu0 0.0
      %550 = vmatpush1.msra.mxu0 0.0
      %551 = vmatprep.subr.mxu0 0.0
      %552 = vmatpush1.msra.mxu0 0.0
      %553 = vmatprep.subr.mxu0 0.0
      %554 = vmatpush1.msra.mxu0 0.0
      %555 = vmatprep.subr.mxu0 0.0
      %556 = vmatpush1.msra.mxu0 0.0
      %557 = vmatprep.subr.mxu0 0.0
      %558 = vmatpush1.msra.mxu0 0.0
      %559 = vmatprep.subr.mxu0 0.0
      %560 = vmatpush1.msra.mxu0 0.0
      %561 = vmatprep.subr.mxu0 0.0
      %562 = vmatpush1.msra.mxu0 0.0
      %563 = vmatprep.subr.mxu0 0.0
      %564 = vmatpush1.msra.mxu0 0.0
      %565 = vmatprep.subr.mxu0 0.0
      %566 = vmatpush1.msra.mxu0 0.0
      %567 = vmatprep.subr.mxu0 0.0
      %568 = vmatpush1.msra.mxu0 0.0
      %569 = vmatprep.mubr.f32.mxu0 0.0
      %570 = vmatmul.mubr.f32.gmra.mrb[0].mxu0 %v499
      %v571 = vpop.f32.mrb[0].mxu0
      %v572 = vadd.f32 0.0, %v571
      %v573 = vpop.f32.mrb[0].mxu0
      %v574 = vadd.f32 0.0, %v573
      %575 = vdwg.mxu0
      %v576 = vadd.f32 %v488, %v572
      %v577 = vadd.f32 %v489, %v574
      %s578 = scalar_lea.vmem %s1, 40
      %v579 = vld [vmem:[%s578] sm:$0xff]
      %580 = vrot.lane.b32.xlu0 %v144, 110
      %v581 = vpop.permute.xlu0 %580
      %582 = vrot.lane.b32.xlu0 %v149, 110
      %v583 = vpop.permute.xlu0 %582
      %vm584 = vcmask 900096
      %v585 = vsel %vm584, %v581, %v583
      %v587 = vsel %vm156, %v579, 0
      %v589 = vsel %vm160, %v585, 0
      %v591 = vsel %vm160, %v583, 0
      %593 = vmatprep.subr.mxu0 %v591
      %594 = vmatpush1.msra.mxu0 %v589
      %595 = vmatprep.subr.mxu0 0.0
      %596 = vmatpush1.msra.mxu0 0.0
      %597 = vmatprep.subr.mxu0 0.0
      %598 = vmatpush1.msra.mxu0 0.0
      %599 = vmatprep.subr.mxu0 0.0
      %600 = vmatpush1.msra.mxu0 0.0
      %601 = vmatprep.subr.mxu0 0.0
      %602 = vmatpush1.msra.mxu0 0.0
      %603 = vmatprep.subr.mxu0 0.0
      %604 = vmatpush1.msra.mxu0 0.0
      %605 = vmatprep.subr.mxu0 0.0
      %606 = vmatpush1.msra.mxu0 0.0
      %607 = vmatprep.subr.mxu0 0.0
      %608 = vmatpush1.msra.mxu0 0.0
      %609 = vmatprep.subr.mxu0 0.0
      %610 = vmatpush1.msra.mxu0 0.0
      %611 = vmatprep.subr.mxu0 0.0
      %612 = vmatpush1.msra.mxu0 0.0
      %613 = vmatprep.subr.mxu0 0.0
      %614 = vmatpush1.msra.mxu0 0.0
      %615 = vmatprep.subr.mxu0 0.0
      %616 = vmatpush1.msra.mxu0 0.0
      %617 = vmatprep.subr.mxu0 0.0
      %618 = vmatpush1.msra.mxu0 0.0
      %619 = vmatprep.subr.mxu0 0.0
      %620 = vmatpush1.msra.mxu0 0.0
      %621 = vmatprep.subr.mxu0 0.0
      %622 = vmatpush1.msra.mxu0 0.0
      %623 = vmatprep.subr.mxu0 0.0
      %624 = vmatpush1.msra.mxu0 0.0
      %625 = vmatprep.subr.mxu0 0.0
      %626 = vmatpush1.msra.mxu0 0.0
      %627 = vmatprep.subr.mxu0 0.0
      %628 = vmatpush1.msra.mxu0 0.0
      %629 = vmatprep.subr.mxu0 0.0
      %630 = vmatpush1.msra.mxu0 0.0
      %631 = vmatprep.subr.mxu0 0.0
      %632 = vmatpush1.msra.mxu0 0.0
      %633 = vmatprep.subr.mxu0 0.0
      %634 = vmatpush1.msra.mxu0 0.0
      %635 = vmatprep.subr.mxu0 0.0
      %636 = vmatpush1.msra.mxu0 0.0
      %637 = vmatprep.subr.mxu0 0.0
      %638 = vmatpush1.msra.mxu0 0.0
      %639 = vmatprep.subr.mxu0 0.0
      %640 = vmatpush1.msra.mxu0 0.0
      %641 = vmatprep.subr.mxu0 0.0
      %642 = vmatpush1.msra.mxu0 0.0
      %643 = vmatprep.subr.mxu0 0.0
      %644 = vmatpush1.msra.mxu0 0.0
      %645 = vmatprep.subr.mxu0 0.0
      %646 = vmatpush1.msra.mxu0 0.0
      %647 = vmatprep.subr.mxu0 0.0
      %648 = vmatpush1.msra.mxu0 0.0
      %649 = vmatprep.subr.mxu0 0.0
      %650 = vmatpush1.msra.mxu0 0.0
      %651 = vmatprep.subr.mxu0 0.0
      %652 = vmatpush1.msra.mxu0 0.0
      %653 = vmatprep.subr.mxu0 0.0
      %654 = vmatpush1.msra.mxu0 0.0
      %655 = vmatprep.subr.mxu0 0.0
      %656 = vmatpush1.msra.mxu0 0.0
      %657 = vmatprep.mubr.f32.mxu0 0.0
      %658 = vmatmul.mubr.f32.gmra.mrb[0].mxu0 %v587
      %v659 = vpop.f32.mrb[0].mxu0
      %v660 = vadd.f32 0.0, %v659
      %v661 = vpop.f32.mrb[0].mxu0
      %v662 = vadd.f32 0.0, %v661
      %663 = vdwg.mxu0
      %v664 = vadd.f32 %v576, %v660
      %v665 = vadd.f32 %v577, %v662
      %s666 = scalar_lea.vmem %s1, 48
      %v667 = vld [vmem:[%s666] sm:$0xff]
      %668 = vrot.lane.b32.xlu0 %v144, 96
      %v669 = vpop.permute.xlu0 %668
      %670 = vrot.lane.b32.xlu0 %v149, 96
      %v671 = vpop.permute.xlu0 %670
      %vm672 = vcmask 785408
      %v673 = vsel %vm672, %v669, %v671
      %v675 = vsel %vm156, %v667, 0
      %v677 = vsel %vm160, %v673, 0
      %v679 = vsel %vm160, %v671, 0
      %681 = vmatprep.subr.mxu0 %v679
      %682 = vmatpush1.msra.mxu0 %v677
      %683 = vmatprep.subr.mxu0 0.0
      %684 = vmatpush1.msra.mxu0 0.0
      %685 = vmatprep.subr.mxu0 0.0
      %686 = vmatpush1.msra.mxu0 0.0
      %687 = vmatprep.subr.mxu0 0.0
      %688 = vmatpush1.msra.mxu0 0.0
      %689 = vmatprep.subr.mxu0 0.0
      %690 = vmatpush1.msra.mxu0 0.0
      %691 = vmatprep.subr.mxu0 0.0
      %692 = vmatpush1.msra.mxu0 0.0
      %693 = vmatprep.subr.mxu0 0.0
      %694 = vmatpush1.msra.mxu0 0.0
      %695 = vmatprep.subr.mxu0 0.0
      %696 = vmatpush1.msra.mxu0 0.0
      %697 = vmatprep.subr.mxu0 0.0
      %698 = vmatpush1.msra.mxu0 0.0
      %699 = vmatprep.subr.mxu0 0.0
      %700 = vmatpush1.msra.mxu0 0.0
      %701 = vmatprep.subr.mxu0 0.0
      %702 = vmatpush1.msra.mxu0 0.0
      %703 = vmatprep.subr.mxu0 0.0
      %704 = vmatpush1.msra.mxu0 0.0
      %705 = vmatprep.subr.mxu0 0.0
      %706 = vmatpush1.msra.mxu0 0.0
      %707 = vmatprep.subr.mxu0 0.0
      %708 = vmatpush1.msra.mxu0 0.0
      %709 = vmatprep.subr.mxu0 0.0
      %710 = vmatpush1.msra.mxu0 0.0
      %711 = vmatprep.subr.mxu0 0.0
      %712 = vmatpush1.msra.mxu0 0.0
      %713 = vmatprep.subr.mxu0 0.0
      %714 = vmatpush1.msra.mxu0 0.0
      %715 = vmatprep.subr.mxu0 0.0
      %716 = vmatpush1.msra.mxu0 0.0
      %717 = vmatprep.subr.mxu0 0.0
      %718 = vmatpush1.msra.mxu0 0.0
      %719 = vmatprep.subr.mxu0 0.0
      %720 = vmatpush1.msra.mxu0 0.0
      %721 = vmatprep.subr.mxu0 0.0
      %722 = vmatpush1.msra.mxu0 0.0
      %723 = vmatprep.subr.mxu0 0.0
      %724 = vmatpush1.msra.mxu0 0.0
      %725 = vmatprep.subr.mxu0 0.0
      %726 = vmatpush1.msra.mxu0 0.0
      %727 = vmatprep.subr.mxu0 0.0
      %728 = vmatpush1.msra.mxu0 0.0
      %729 = vmatprep.subr.mxu0 0.0
      %730 = vmatpush1.msra.mxu0 0.0
      %731 = vmatprep.subr.mxu0 0.0
      %732 = vmatpush1.msra.mxu0 0.0
      %733 = vmatprep.subr.mxu0 0.0
      %734 = vmatpush1.msra.mxu0 0.0
      %735 = vmatprep.subr.mxu0 0.0
      %736 = vmatpush1.msra.mxu0 0.0
      %737 = vmatprep.subr.mxu0 0.0
      %738 = vmatpush1.msra.mxu0 0.0
      %739 = vmatprep.subr.mxu0 0.0
      %740 = vmatpush1.msra.mxu0 0.0
      %741 = vmatprep.subr.mxu0 0.0
      %742 = vmatpush1.msra.mxu0 0.0
      %743 = vmatprep.subr.mxu0 0.0
      %744 = vmatpush1.msra.mxu0 0.0
      %745 = vmatprep.mubr.f32.mxu0 0.0
      %746 = vmatmul.mubr.f32.gmra.mrb[0].mxu0 %v675
      %v747 = vpop.f32.mrb[0].mxu0
      %v748 = vadd.f32 0.0, %v747
      %v749 = vpop.f32.mrb[0].mxu0
      %v750 = vadd.f32 0.0, %v749
      %751 = vdwg.mxu0
      %v752 = vadd.f32 %v664, %v748
      %v753 = vadd.f32 %v665, %v750
      %s754 = scalar_lea.vmem %s1, 56
      %v755 = vld [vmem:[%s754] sm:$0xff]
      %756 = vrot.lane.b32.xlu0 %v144, 95
      %v757 = vpop.permute.xlu0 %756
      %758 = vrot.lane.b32.xlu0 %v149, 95
      %v759 = vpop.permute.xlu0 %758
      %vm760 = vcmask 777216
      %v761 = vsel %vm760, %v757, %v759
      %v763 = vsel %vm156, %v755, 0
      %v765 = vsel %vm160, %v761, 0
      %v767 = vsel %vm160, %v759, 0
      %769 = vmatprep.subr.mxu0 %v767
      %770 = vmatpush1.msra.mxu0 %v765
      %771 = vmatprep.subr.mxu0 0.0
      %772 = vmatpush1.msra.mxu0 0.0
      %773 = vmatprep.subr.mxu0 0.0
      %774 = vmatpush1.msra.mxu0 0.0
      %775 = vmatprep.subr.mxu0 0.0
      %776 = vmatpush1.msra.mxu0 0.0
      %777 = vmatprep.subr.mxu0 0.0
      %778 = vmatpush1.msra.mxu0 0.0
      %779 = vmatprep.subr.mxu0 0.0
      %780 = vmatpush1.msra.mxu0 0.0
      %781 = vmatprep.subr.mxu0 0.0
      %782 = vmatpush1.msra.mxu0 0.0
      %783 = vmatprep.subr.mxu0 0.0
      %784 = vmatpush1.msra.mxu0 0.0
      %785 = vmatprep.subr.mxu0 0.0
      %786 = vmatpush1.msra.mxu0 0.0
      %787 = vmatprep.subr.mxu0 0.0
      %788 = vmatpush1.msra.mxu0 0.0
      %789 = vmatprep.subr.mxu0 0.0
      %790 = vmatpush1.msra.mxu0 0.0
      %791 = vmatprep.subr.mxu0 0.0
      %792 = vmatpush1.msra.mxu0 0.0
      %793 = vmatprep.subr.mxu0 0.0
      %794 = vmatpush1.msra.mxu0 0.0
      %795 = vmatprep.subr.mxu0 0.0
      %796 = vmatpush1.msra.mxu0 0.0
      %797 = vmatprep.subr.mxu0 0.0
      %798 = vmatpush1.msra.mxu0 0.0
      %799 = vmatprep.subr.mxu0 0.0
      %800 = vmatpush1.msra.mxu0 0.0
      %801 = vmatprep.subr.mxu0 0.0
      %802 = vmatpush1.msra.mxu0 0.0
      %803 = vmatprep.subr.mxu0 0.0
      %804 = vmatpush1.msra.mxu0 0.0
      %805 = vmatprep.subr.mxu0 0.0
      %806 = vmatpush1.msra.mxu0 0.0
      %807 = vmatprep.subr.mxu0 0.0
      %808 = vmatpush1.msra.mxu0 0.0
      %809 = vmatprep.subr.mxu0 0.0
      %810 = vmatpush1.msra.mxu0 0.0
      %811 = vmatprep.subr.mxu0 0.0
      %812 = vmatpush1.msra.mxu0 0.0
      %813 = vmatprep.subr.mxu0 0.0
      %814 = vmatpush1.msra.mxu0 0.0
      %815 = vmatprep.subr.mxu0 0.0
      %816 = vmatpush1.msra.mxu0 0.0
      %817 = vmatprep.subr.mxu0 0.0
      %818 = vmatpush1.msra.mxu0 0.0
      %819 = vmatprep.subr.mxu0 0.0
      %820 = vmatpush1.msra.mxu0 0.0
      %821 = vmatprep.subr.mxu0 0.0
      %822 = vmatpush1.msra.mxu0 0.0
      %823 = vmatprep.subr.mxu0 0.0
      %824 = vmatpush1.msra.mxu0 0.0
      %825 = vmatprep.subr.mxu0 0.0
      %826 = vmatpush1.msra.mxu0 0.0
      %827 = vmatprep.subr.mxu0 0.0
      %828 = vmatpush1.msra.mxu0 0.0
      %829 = vmatprep.subr.mxu0 0.0
      %830 = vmatpush1.msra.mxu0 0.0
      %831 = vmatprep.subr.mxu0 0.0
      %832 = vmatpush1.msra.mxu0 0.0
      %833 = vmatprep.mubr.f32.mxu0 0.0
      %834 = vmatmul.mubr.f32.gmra.mrb[0].mxu0 %v763
      %v835 = vpop.f32.mrb[0].mxu0
      %v836 = vadd.f32 0.0, %v835
      %v837 = vpop.f32.mrb[0].mxu0
      %v838 = vadd.f32 0.0, %v837
      %839 = vdwg.mxu0
      %v840 = vadd.f32 %v752, %v836
      %v841 = vadd.f32 %v753, %v838
      %s842 = scalar_lea.vmem %s1, 64
      %v843 = vld [vmem:[%s842] sm:$0xff]
      %844 = vrot.lane.b32.xlu0 %v144, 94
      %v845 = vpop.permute.xlu0 %844
      %846 = vrot.lane.b32.xlu0 %v149, 94
      %v847 = vpop.permute.xlu0 %846
      %vm848 = vcmask 769024
      %v849 = vsel %vm848, %v845, %v847
      %v851 = vsel %vm156, %v843, 0
      %v853 = vsel %vm160, %v849, 0
      %v855 = vsel %vm160, %v847, 0
      %857 = vmatprep.subr.mxu0 %v855
      %858 = vmatpush1.msra.mxu0 %v853
      %859 = vmatprep.subr.mxu0 0.0
      %860 = vmatpush1.msra.mxu0 0.0
      %861 = vmatprep.subr.mxu0 0.0
      %862 = vmatpush1.msra.mxu0 0.0
      %863 = vmatprep.subr.mxu0 0.0
      %864 = vmatpush1.msra.mxu0 0.0
      %865 = vmatprep.subr.mxu0 0.0
      %866 = vmatpush1.msra.mxu0 0.0
      %867 = vmatprep.subr.mxu0 0.0
      %868 = vmatpush1.msra.mxu0 0.0
      %869 = vmatprep.subr.mxu0 0.0
      %870 = vmatpush1.msra.mxu0 0.0
      %871 = vmatprep.subr.mxu0 0.0
      %872 = vmatpush1.msra.mxu0 0.0
      %873 = vmatprep.subr.mxu0 0.0
      %874 = vmatpush1.msra.mxu0 0.0
      %875 = vmatprep.subr.mxu0 0.0
      %876 = vmatpush1.msra.mxu0 0.0
      %877 = vmatprep.subr.mxu0 0.0
      %878 = vmatpush1.msra.mxu0 0.0
      %879 = vmatprep.subr.mxu0 0.0
      %880 = vmatpush1.msra.mxu0 0.0
      %881 = vmatprep.subr.mxu0 0.0
      %882 = vmatpush1.msra.mxu0 0.0
      %883 = vmatprep.subr.mxu0 0.0
      %884 = vmatpush1.msra.mxu0 0.0
      %885 = vmatprep.subr.mxu0 0.0
      %886 = vmatpush1.msra.mxu0 0.0
      %887 = vmatprep.subr.mxu0 0.0
      %888 = vmatpush1.msra.mxu0 0.0
      %889 = vmatprep.subr.mxu0 0.0
      %890 = vmatpush1.msra.mxu0 0.0
      %891 = vmatprep.subr.mxu0 0.0
      %892 = vmatpush1.msra.mxu0 0.0
      %893 = vmatprep.subr.mxu0 0.0
      %894 = vmatpush1.msra.mxu0 0.0
      %895 = vmatprep.subr.mxu0 0.0
      %896 = vmatpush1.msra.mxu0 0.0
      %897 = vmatprep.subr.mxu0 0.0
      %898 = vmatpush1.msra.mxu0 0.0
      %899 = vmatprep.subr.mxu0 0.0
      %900 = vmatpush1.msra.mxu0 0.0
      %901 = vmatprep.subr.mxu0 0.0
      %902 = vmatpush1.msra.mxu0 0.0
      %903 = vmatprep.subr.mxu0 0.0
      %904 = vmatpush1.msra.mxu0 0.0
      %905 = vmatprep.subr.mxu0 0.0
      %906 = vmatpush1.msra.mxu0 0.0
      %907 = vmatprep.subr.mxu0 0.0
      %908 = vmatpush1.msra.mxu0 0.0
      %909 = vmatprep.subr.mxu0 0.0
      %910 = vmatpush1.msra.mxu0 0.0
      %911 = vmatprep.subr.mxu0 0.0
      %912 = vmatpush1.msra.mxu0 0.0
      %913 = vmatprep.subr.mxu0 0.0
      %914 = vmatpush1.msra.mxu0 0.0
      %915 = vmatprep.subr.mxu0 0.0
      %916 = vmatpush1.msra.mxu0 0.0
      %917 = vmatprep.subr.mxu0 0.0
      %918 = vmatpush1.msra.mxu0 0.0
      %919 = vmatprep.subr.mxu0 0.0
      %920 = vmatpush1.msra.mxu0 0.0
      %921 = vmatprep.mubr.f32.mxu0 0.0
      %922 = vmatmul.mubr.f32.gmra.mrb[0].mxu0 %v851
      %v923 = vpop.f32.mrb[0].mxu0
      %v924 = vadd.f32 0.0, %v923
      %v925 = vpop.f32.mrb[0].mxu0
      %v926 = vadd.f32 0.0, %v925
      %927 = vdwg.mxu0
      %v928 = vadd.f32 %v840, %v924
      %v929 = vadd.f32 %v841, %v926
      %v930 = vlaneseq
      %v931 = vand.u32 %v930, 127
      %v932 = vadd.s32 %v931, 128
      %vm933 = vcmp.lt.s32.totalorder %v931, 0
      %v934 = vsub.s32 0, %v931
      %v935 = vsel %vm933, %v934, %v931
      %v936 = vshrl.u32 %v935, 4
      %v937 = vand.u32 %v935, 15
      %v938 = vsub.s32 0, %v937
      %v939 = vsel %vm933, %v938, %v937
      %vm940 = vcmp.lt.s32.totalorder %v932, 0
      %v941 = vsub.s32 0, %v932
      %v942 = vsel %vm940, %v941, %v932
      %v943 = vshrl.u32 %v942, 4
      %v944 = vand.u32 %v942, 15
      %v945 = vsub.s32 0, %v944
      %v946 = vsel %vm940, %v945, %v944
      %vm947 = vcmp.ne.s32.totalorder %v939, 0
      %vm948 = vcmp.ne.s32.totalorder %v946, 0
      %vm949 = vcmp.lt.s32.totalorder %v939, 0
      %vm950 = vcmp.lt.s32.totalorder %v946, 0
      %vm951 = vmand %vm949, %vm947
      %vm952 = vmand %vm950, %vm948
      %v953 = vadd.s32 %v939, 16
      %v954 = vadd.s32 %v946, 16
      %v955 = vsel %vm951, %v953, %v939
      %v956 = vsel %vm952, %v954, %v946
      %vm957 = vcmp.lt.s32.totalorder %v955, 14
      %vm958 = vcmp.lt.s32.totalorder %v956, 14
      %v959 = vsel %vm957, 1, 0
      %v960 = vsel %vm958, 1, 0
      %vm961 = vcmp.eq.s32.totalorder %v959, 1
      %vm962 = vcmp.eq.s32.totalorder %v960, 1
      %v963 = vsel %vm961, %v928, 0.0
      %v964 = vsel %vm962, %v929, 0.0
      %v965 = vsel %vm848, %v964, 0.0
      %v966 = vadd.f32 %v963, %v965
      %967 = vadd.xlane.f32.xlu0 %v966
      %v968 = vpop.xlane.xlu0 %967
      %v969 = vmul.f32 %v968, 0.0051020407
      %v970 = vmul.f32 %v963, %v963
      %v971 = vmul.f32 %v964, %v964
      %v972 = vsel %vm848, %v971, 0.0
      %v973 = vadd.f32 %v970, %v972
      %974 = vadd.xlane.f32.xlu0 %v973
      %v975 = vpop.xlane.xlu0 %974
      %v976 = vmul.f32 %v975, 0.0051020407
      %v977 = vmul.f32 %v969, %v969
      %v978 = vsub.f32 %v976, %v977
      %v979 = vmax.f32 %v978, 0.0
      %v980 = vsub.f32 %v928, %v969
      %v981 = vsub.f32 %v929, %v969
      %v982 = vadd.f32 %v979, 1e-05
      %v983 = vrsqrt.pop %v982
      %v984 = vmul.f32 %v980, %v983
      %v985 = vmul.f32 %v981, %v983
      %vm986 = vcmp.ge.f32.partialorder %v984, 0.0
      %vm987 = vcmp.ge.f32.partialorder %v985, 0.0
      %v988 = vmul.f32 %v984, 0.01
      %v989 = vmul.f32 %v985, 0.01
      %v990 = vsel %vm986, %v984, %v988
      %v991 = vsel %vm987, %v985, %v989
      %v993 = vcombine.high %v990, %v990
      %v995 = vunpack.c.l.s4 1966171168
      %v996 = vunpack.c.0.s8 %v995
      %v997 = vlaneseq
      %v998 = vshrl.u32 %v997, 7
      %v999 = vsub.s32 %v996, %v998
      %v1000 = vrot.slane %v990, %v999
      %v1002 = vunpack.c.l.s4 1966171168
      %v1003 = vunpack.c.0.s8 %v1002
      %v1004 = vlaneseq
      %v1005 = vshrl.u32 %v1004, 7
      %v1006 = vsub.s32 %v1003, %v1005
      %v1007 = vrot.slane %v993, %v1006
      %v1008 = vcombine.high %v1000, %v1000
      %v1009 = vcombine.high %v1007, %v1007
      %v1011 = vunpack.c.l.s4 1966171168
      %v1012 = vunpack.c.0.s8 %v1011
      %v1013 = vlaneseq
      %v1014 = vshrl.u32 %v1013, 7
      %v1015 = vsub.s32 %v1012, %v1014
      %v1016 = vrot.slane %v1000, %v1015
      %v1018 = vunpack.c.l.s4 1966171168
      %v1019 = vunpack.c.0.s8 %v1018
      %v1020 = vlaneseq
      %v1021 = vshrl.u32 %v1020, 7
      %v1022 = vsub.s32 %v1019, %v1021
      %v1023 = vrot.slane %v1007, %v1022
      %v1025 = vunpack.c.l.s4 1966171168
      %v1026 = vunpack.c.0.s8 %v1025
      %v1027 = vlaneseq
      %v1028 = vshrl.u32 %v1027, 7
      %v1029 = vsub.s32 %v1026, %v1028
      %v1030 = vrot.slane %v1008, %v1029
      %v1032 = vunpack.c.l.s4 1966171168
      %v1033 = vunpack.c.0.s8 %v1032
      %v1034 = vlaneseq
      %v1035 = vshrl.u32 %v1034, 7
      %v1036 = vsub.s32 %v1033, %v1035
      %v1037 = vrot.slane %v1009, %v1036
      %v1038 = vcombine.high %v1016, %v1016
      %v1039 = vcombine.high %v1023, %v1023
      %v1040 = vcombine.high %v1030, %v1030
      %v1041 = vcombine.high %v1037, %v1037
      %vm1050 = vcmask 106496
      %1051 = vst.msk [vmem:[%s143] sm:$0x1] %vm1050, %v1016
      %1052 = vst.msk [vmem:[%s143 + $0x10] sm:$0x1] %vm1050, %v1030
      %1053 = vst.msk [vmem:[%s143 + $0x20] sm:$0x1] %vm1050, %v1038
      %1054 = vst.msk [vmem:[%s143 + $0x30] sm:$0x1] %vm1050, %v1040
      %1055 = vst.msk [vmem:[%s143 + $0x40] sm:$0x1] %vm1050, %v1023
      %1056 = vst.msk [vmem:[%s143 + $0x50] sm:$0x1] %vm1050, %v1037
      %1057 = vst.msk [vmem:[%s143 + $0x60] sm:$0x1] %vm1050, %v1039
      %1058 = vst.msk [vmem:[%s143 + $0x70] sm:$0x1] %vm1050, %v1041
      %v1059 = vlaneseq
      %v1060 = vshrl.u32 %v1059, 7
      %v1061 = vsub.s32 0, %v1060
      %v1062 = vrot.slane %v1016, %v1061
      %v1063 = vlaneseq
      %v1064 = vshrl.u32 %v1063, 7
      %v1065 = vsub.s32 0, %v1064
      %v1066 = vrot.slane %v1030, %v1065
      %v1067 = vlaneseq
      %v1068 = vshrl.u32 %v1067, 7
      %v1069 = vsub.s32 0, %v1068
      %v1070 = vrot.slane %v1038, %v1069
      %v1071 = vlaneseq
      %v1072 = vshrl.u32 %v1071, 7
      %v1073 = vsub.s32 0, %v1072
      %v1074 = vrot.slane %v1040, %v1073
      %v1075 = vlaneseq
      %v1076 = vshrl.u32 %v1075, 7
      %v1077 = vsub.s32 0, %v1076
      %v1078 = vrot.slane %v1023, %v1077
      %v1079 = vlaneseq
      %v1080 = vshrl.u32 %v1079, 7
      %v1081 = vsub.s32 0, %v1080
      %v1082 = vrot.slane %v1037, %v1081
      %v1083 = vlaneseq
      %v1084 = vshrl.u32 %v1083, 7
      %v1085 = vsub.s32 0, %v1084
      %v1086 = vrot.slane %v1039, %v1085
      %v1087 = vlaneseq
      %v1088 = vshrl.u32 %v1087, 7
      %v1089 = vsub.s32 0, %v1088
      %v1090 = vrot.slane %v1041, %v1089
      %1091 = vrot.lane.b32.xlu0 %v1062, 112
      %v1092 = vpop.permute.xlu0 %1091
      %1093 = vrot.lane.b32.xlu0 %v1066, 112
      %v1094 = vpop.permute.xlu0 %1093
      %1095 = vrot.lane.b32.xlu0 %v1070, 112
      %v1096 = vpop.permute.xlu0 %1095
      %1097 = vrot.lane.b32.xlu0 %v1074, 112
      %v1098 = vpop.permute.xlu0 %1097
      %1099 = vrot.lane.b32.xlu0 %v1078, 112
      %v1100 = vpop.permute.xlu0 %1099
      %1101 = vrot.lane.b32.xlu0 %v1082, 112
      %v1102 = vpop.permute.xlu0 %1101
      %1103 = vrot.lane.b32.xlu0 %v1086, 112
      %v1104 = vpop.permute.xlu0 %1103
      %1105 = vrot.lane.b32.xlu0 %v1090, 112
      %v1106 = vpop.permute.xlu0 %1105
      %1115 = vst.msk [vmem:[%s143 + $0x1] sm:$0x1] %vm1050, %v1092
      %1116 = vst.msk [vmem:[%s143 + $0x11] sm:$0x1] %vm1050, %v1094
      %1117 = vst.msk [vmem:[%s143 + $0x21] sm:$0x1] %vm1050, %v1096
      %1118 = vst.msk [vmem:[%s143 + $0x31] sm:$0x1] %vm1050, %v1098
      %1119 = vst.msk [vmem:[%s143 + $0x41] sm:$0x1] %vm1050, %v1100
      %1120 = vst.msk [vmem:[%s143 + $0x51] sm:$0x1] %vm1050, %v1102
      %1121 = vst.msk [vmem:[%s143 + $0x61] sm:$0x1] %vm1050, %v1104
      %1122 = vst.msk [vmem:[%s143 + $0x71] sm:$0x1] %vm1050, %v1106
      %1123 = vrot.lane.b32.xlu0 %v1062, 96
      %v1124 = vpop.permute.xlu0 %1123
      %1125 = vrot.lane.b32.xlu0 %v1066, 96
      %v1126 = vpop.permute.xlu0 %1125
      %1127 = vrot.lane.b32.xlu0 %v1070, 96
      %v1128 = vpop.permute.xlu0 %1127
      %1129 = vrot.lane.b32.xlu0 %v1074, 96
      %v1130 = vpop.permute.xlu0 %1129
      %1131 = vrot.lane.b32.xlu0 %v1078, 96
      %v1132 = vpop.permute.xlu0 %1131
      %1133 = vrot.lane.b32.xlu0 %v1082, 96
      %v1134 = vpop.permute.xlu0 %1133
      %1135 = vrot.lane.b32.xlu0 %v1086, 96
      %v1136 = vpop.permute.xlu0 %1135
      %1137 = vrot.lane.b32.xlu0 %v1090, 96
      %v1138 = vpop.permute.xlu0 %1137
      %1147 = vst.msk [vmem:[%s143 + $0x2] sm:$0x1] %vm1050, %v1124
      %1148 = vst.msk [vmem:[%s143 + $0x12] sm:$0x1] %vm1050, %v1126
      %1149 = vst.msk [vmem:[%s143 + $0x22] sm:$0x1] %vm1050, %v1128
      %1150 = vst.msk [vmem:[%s143 + $0x32] sm:$0x1] %vm1050, %v1130
      %1151 = vst.msk [vmem:[%s143 + $0x42] sm:$0x1] %vm1050, %v1132
      %1152 = vst.msk [vmem:[%s143 + $0x52] sm:$0x1] %vm1050, %v1134
      %1153 = vst.msk [vmem:[%s143 + $0x62] sm:$0x1] %vm1050, %v1136
      %1154 = vst.msk [vmem:[%s143 + $0x72] sm:$0x1] %vm1050, %v1138
      %1155 = vrot.lane.b32.xlu0 %v1062, 80
      %v1156 = vpop.permute.xlu0 %1155
      %1157 = vrot.lane.b32.xlu0 %v1066, 80
      %v1158 = vpop.permute.xlu0 %1157
      %1159 = vrot.lane.b32.xlu0 %v1070, 80
      %v1160 = vpop.permute.xlu0 %1159
      %1161 = vrot.lane.b32.xlu0 %v1074, 80
      %v1162 = vpop.permute.xlu0 %1161
      %1163 = vrot.lane.b32.xlu0 %v1078, 80
      %v1164 = vpop.permute.xlu0 %1163
      %1165 = vrot.lane.b32.xlu0 %v1082, 80
      %v1166 = vpop.permute.xlu0 %1165
      %1167 = vrot.lane.b32.xlu0 %v1086, 80
      %v1168 = vpop.permute.xlu0 %1167
      %1169 = vrot.lane.b32.xlu0 %v1090, 80
      %v1170 = vpop.permute.xlu0 %1169
      %1179 = vst.msk [vmem:[%s143 + $0x3] sm:$0x1] %vm1050, %v1156
      %1180 = vst.msk [vmem:[%s143 + $0x13] sm:$0x1] %vm1050, %v1158
      %1181 = vst.msk [vmem:[%s143 + $0x23] sm:$0x1] %vm1050, %v1160
      %1182 = vst.msk [vmem:[%s143 + $0x33] sm:$0x1] %vm1050, %v1162
      %1183 = vst.msk [vmem:[%s143 + $0x43] sm:$0x1] %vm1050, %v1164
      %1184 = vst.msk [vmem:[%s143 + $0x53] sm:$0x1] %vm1050, %v1166
      %1185 = vst.msk [vmem:[%s143 + $0x63] sm:$0x1] %vm1050, %v1168
      %1186 = vst.msk [vmem:[%s143 + $0x73] sm:$0x1] %vm1050, %v1170
      %1187 = vrot.lane.b32.xlu0 %v1062, 64
      %v1188 = vpop.permute.xlu0 %1187
      %1189 = vrot.lane.b32.xlu0 %v1066, 64
      %v1190 = vpop.permute.xlu0 %1189
      %1191 = vrot.lane.b32.xlu0 %v1070, 64
      %v1192 = vpop.permute.xlu0 %1191
      %1193 = vrot.lane.b32.xlu0 %v1074, 64
      %v1194 = vpop.permute.xlu0 %1193
      %1195 = vrot.lane.b32.xlu0 %v1078, 64
      %v1196 = vpop.permute.xlu0 %1195
      %1197 = vrot.lane.b32.xlu0 %v1082, 64
      %v1198 = vpop.permute.xlu0 %1197
      %1199 = vrot.lane.b32.xlu0 %v1086, 64
      %v1200 = vpop.permute.xlu0 %1199
      %1201 = vrot.lane.b32.xlu0 %v1090, 64
      %v1202 = vpop.permute.xlu0 %1201
      %1211 = vst.msk [vmem:[%s143 + $0x4] sm:$0x1] %vm1050, %v1188
      %1212 = vst.msk [vmem:[%s143 + $0x14] sm:$0x1] %vm1050, %v1190
      %1213 = vst.msk [vmem:[%s143 + $0x24] sm:$0x1] %vm1050, %v1192
      %1214 = vst.msk [vmem:[%s143 + $0x34] sm:$0x1] %vm1050, %v1194
      %1215 = vst.msk [vmem:[%s143 + $0x44] sm:$0x1] %vm1050, %v1196
      %1216 = vst.msk [vmem:[%s143 + $0x54] sm:$0x1] %vm1050, %v1198
      %1217 = vst.msk [vmem:[%s143 + $0x64] sm:$0x1] %vm1050, %v1200
      %1218 = vst.msk [vmem:[%s143 + $0x74] sm:$0x1] %vm1050, %v1202
      %1219 = vrot.lane.b32.xlu0 %v1062, 48
      %v1220 = vpop.permute.xlu0 %1219
      %1221 = vrot.lane.b32.xlu0 %v1066, 48
      %v1222 = vpop.permute.xlu0 %1221
      %1223 = vrot.lane.b32.xlu0 %v1070, 48
      %v1224 = vpop.permute.xlu0 %1223
      %1225 = vrot.lane.b32.xlu0 %v1074, 48
      %v1226 = vpop.permute.xlu0 %1225
      %1227 = vrot.lane.b32.xlu0 %v1078, 48
      %v1228 = vpop.permute.xlu0 %1227
      %1229 = vrot.lane.b32.xlu0 %v1082, 48
      %v1230 = vpop.permute.xlu0 %1229
      %1231 = vrot.lane.b32.xlu0 %v1086, 48
      %v1232 = vpop.permute.xlu0 %1231
      %1233 = vrot.lane.b32.xlu0 %v1090, 48
      %v1234 = vpop.permute.xlu0 %1233
      %1243 = vst.msk [vmem:[%s143 + $0x5] sm:$0x1] %vm1050, %v1220
      %1244 = vst.msk [vmem:[%s143 + $0x15] sm:$0x1] %vm1050, %v1222
      %1245 = vst.msk [vmem:[%s143 + $0x25] sm:$0x1] %vm1050, %v1224
      %1246 = vst.msk [vmem:[%s143 + $0x35] sm:$0x1] %vm1050, %v1226
      %1247 = vst.msk [vmem:[%s143 + $0x45] sm:$0x1] %vm1050, %v1228
      %1248 = vst.msk [vmem:[%s143 + $0x55] sm:$0x1] %vm1050, %v1230
      %1249 = vst.msk [vmem:[%s143 + $0x65] sm:$0x1] %vm1050, %v1232
      %1250 = vst.msk [vmem:[%s143 + $0x75] sm:$0x1] %vm1050, %v1234
      %1251 = vrot.lane.b32.xlu0 %v1062, 32
      %v1252 = vpop.permute.xlu0 %1251
      %1253 = vrot.lane.b32.xlu0 %v1066, 32
      %v1254 = vpop.permute.xlu0 %1253
      %1255 = vrot.lane.b32.xlu0 %v1070, 32
      %v1256 = vpop.permute.xlu0 %1255
      %1257 = vrot.lane.b32.xlu0 %v1074, 32
      %v1258 = vpop.permute.xlu0 %1257
      %1259 = vrot.lane.b32.xlu0 %v1078, 32
      %v1260 = vpop.permute.xlu0 %1259
      %1261 = vrot.lane.b32.xlu0 %v1082, 32
      %v1262 = vpop.permute.xlu0 %1261
      %1263 = vrot.lane.b32.xlu0 %v1086, 32
      %v1264 = vpop.permute.xlu0 %1263
      %1265 = vrot.lane.b32.xlu0 %v1090, 32
      %v1266 = vpop.permute.xlu0 %1265
      %1275 = vst.msk [vmem:[%s143 + $0x6] sm:$0x1] %vm1050, %v1252
      %1276 = vst.msk [vmem:[%s143 + $0x16] sm:$0x1] %vm1050, %v1254
      %1277 = vst.msk [vmem:[%s143 + $0x26] sm:$0x1] %vm1050, %v1256
      %1278 = vst.msk [vmem:[%s143 + $0x36] sm:$0x1] %vm1050, %v1258
      %1279 = vst.msk [vmem:[%s143 + $0x46] sm:$0x1] %vm1050, %v1260
      %1280 = vst.msk [vmem:[%s143 + $0x56] sm:$0x1] %vm1050, %v1262
      %1281 = vst.msk [vmem:[%s143 + $0x66] sm:$0x1] %vm1050, %v1264
      %1282 = vst.msk [vmem:[%s143 + $0x76] sm:$0x1] %vm1050, %v1266
      %1283 = vrot.lane.b32.xlu0 %v1062, 16
      %v1284 = vpop.permute.xlu0 %1283
      %1285 = vrot.lane.b32.xlu0 %v1066, 16
      %v1286 = vpop.permute.xlu0 %1285
      %1287 = vrot.lane.b32.xlu0 %v1070, 16
      %v1288 = vpop.permute.xlu0 %1287
      %1289 = vrot.lane.b32.xlu0 %v1074, 16
      %v1290 = vpop.permute.xlu0 %1289
      %1291 = vrot.lane.b32.xlu0 %v1078, 16
      %v1292 = vpop.permute.xlu0 %1291
      %1293 = vrot.lane.b32.xlu0 %v1082, 16
      %v1294 = vpop.permute.xlu0 %1293
      %1295 = vrot.lane.b32.xlu0 %v1086, 16
      %v1296 = vpop.permute.xlu0 %1295
      %1297 = vrot.lane.b32.xlu0 %v1090, 16
      %v1298 = vpop.permute.xlu0 %1297
      %1307 = vst.msk [vmem:[%s143 + $0x7] sm:$0x1] %vm1050, %v1284
      %1308 = vst.msk [vmem:[%s143 + $0x17] sm:$0x1] %vm1050, %v1286
      %1309 = vst.msk [vmem:[%s143 + $0x27] sm:$0x1] %vm1050, %v1288
      %1310 = vst.msk [vmem:[%s143 + $0x37] sm:$0x1] %vm1050, %v1290
      %1311 = vst.msk [vmem:[%s143 + $0x47] sm:$0x1] %vm1050, %v1292
      %1312 = vst.msk [vmem:[%s143 + $0x57] sm:$0x1] %vm1050, %v1294
      %1313 = vst.msk [vmem:[%s143 + $0x67] sm:$0x1] %vm1050, %v1296
      %1314 = vst.msk [vmem:[%s143 + $0x77] sm:$0x1] %vm1050, %v1298
      %v1316 = vcombine.high %v991, %v991
      %v1318 = vunpack.c.l.s4 1966171168
      %v1319 = vunpack.c.0.s8 %v1318
      %v1320 = vlaneseq
      %v1321 = vshrl.u32 %v1320, 7
      %v1322 = vsub.s32 %v1319, %v1321
      %v1323 = vrot.slane %v991, %v1322
      %v1325 = vunpack.c.l.s4 1966171168
      %v1326 = vunpack.c.0.s8 %v1325
      %v1327 = vlaneseq
      %v1328 = vshrl.u32 %v1327, 7
      %v1329 = vsub.s32 %v1326, %v1328
      %v1330 = vrot.slane %v1316, %v1329
      %v1331 = vcombine.high %v1323, %v1323
      %v1332 = vcombine.high %v1330, %v1330
      %v1334 = vunpack.c.l.s4 1966171168
      %v1335 = vunpack.c.0.s8 %v1334
      %v1336 = vlaneseq
      %v1337 = vshrl.u32 %v1336, 7
      %v1338 = vsub.s32 %v1335, %v1337
      %v1339 = vrot.slane %v1323, %v1338
      %v1341 = vunpack.c.l.s4 1966171168
      %v1342 = vunpack.c.0.s8 %v1341
      %v1343 = vlaneseq
      %v1344 = vshrl.u32 %v1343, 7
      %v1345 = vsub.s32 %v1342, %v1344
      %v1346 = vrot.slane %v1330, %v1345
      %v1348 = vunpack.c.l.s4 1966171168
      %v1349 = vunpack.c.0.s8 %v1348
      %v1350 = vlaneseq
      %v1351 = vshrl.u32 %v1350, 7
      %v1352 = vsub.s32 %v1349, %v1351
      %v1353 = vrot.slane %v1331, %v1352
      %v1355 = vunpack.c.l.s4 1966171168
      %v1356 = vunpack.c.0.s8 %v1355
      %v1357 = vlaneseq
      %v1358 = vshrl.u32 %v1357, 7
      %v1359 = vsub.s32 %v1356, %v1358
      %v1360 = vrot.slane %v1332, %v1359
      %v1361 = vcombine.high %v1339, %v1339
      %v1362 = vcombine.high %v1346, %v1346
      %v1363 = vcombine.high %v1353, %v1353
      %v1364 = vcombine.high %v1360, %v1360
      %1373 = vst.msk [vmem:[%s143 + $0x8] sm:$0x1] %vm1050, %v1339
      %1374 = vst.msk [vmem:[%s143 + $0x18] sm:$0x1] %vm1050, %v1353
      %1375 = vst.msk [vmem:[%s143 + $0x28] sm:$0x1] %vm1050, %v1361
      %1376 = vst.msk [vmem:[%s143 + $0x38] sm:$0x1] %vm1050, %v1363
      %1377 = vst.msk [vmem:[%s143 + $0x48] sm:$0x1] %vm1050, %v1346
      %1378 = vst.msk [vmem:[%s143 + $0x58] sm:$0x1] %vm1050, %v1360
      %1379 = vst.msk [vmem:[%s143 + $0x68] sm:$0x1] %vm1050, %v1362
      %1380 = vst.msk [vmem:[%s143 + $0x78] sm:$0x1] %vm1050, %v1364
      %v1381 = vlaneseq
      %v1382 = vshrl.u32 %v1381, 7
      %v1383 = vsub.s32 0, %v1382
      %v1384 = vrot.slane %v1339, %v1383
      %v1385 = vlaneseq
      %v1386 = vshrl.u32 %v1385, 7
      %v1387 = vsub.s32 0, %v1386
      %v1388 = vrot.slane %v1353, %v1387
      %v1389 = vlaneseq
      %v1390 = vshrl.u32 %v1389, 7
      %v1391 = vsub.s32 0, %v1390
      %v1392 = vrot.slane %v1361, %v1391
      %v1393 = vlaneseq
      %v1394 = vshrl.u32 %v1393, 7
      %v1395 = vsub.s32 0, %v1394
      %v1396 = vrot.slane %v1363, %v1395
      %v1397 = vlaneseq
      %v1398 = vshrl.u32 %v1397, 7
      %v1399 = vsub.s32 0, %v1398
      %v1400 = vrot.slane %v1346, %v1399
      %v1401 = vlaneseq
      %v1402 = vshrl.u32 %v1401, 7
      %v1403 = vsub.s32 0, %v1402
      %v1404 = vrot.slane %v1360, %v1403
      %v1405 = vlaneseq
      %v1406 = vshrl.u32 %v1405, 7
      %v1407 = vsub.s32 0, %v1406
      %v1408 = vrot.slane %v1362, %v1407
      %v1409 = vlaneseq
      %v1410 = vshrl.u32 %v1409, 7
      %v1411 = vsub.s32 0, %v1410
      %v1412 = vrot.slane %v1364, %v1411
      %1413 = vrot.lane.b32.xlu0 %v1384, 112
      %v1414 = vpop.permute.xlu0 %1413
      %1415 = vrot.lane.b32.xlu0 %v1388, 112
      %v1416 = vpop.permute.xlu0 %1415
      %1417 = vrot.lane.b32.xlu0 %v1392, 112
      %v1418 = vpop.permute.xlu0 %1417
      %1419 = vrot.lane.b32.xlu0 %v1396, 112
      %v1420 = vpop.permute.xlu0 %1419
      %1421 = vrot.lane.b32.xlu0 %v1400, 112
      %v1422 = vpop.permute.xlu0 %1421
      %1423 = vrot.lane.b32.xlu0 %v1404, 112
      %v1424 = vpop.permute.xlu0 %1423
      %1425 = vrot.lane.b32.xlu0 %v1408, 112
      %v1426 = vpop.permute.xlu0 %1425
      %1427 = vrot.lane.b32.xlu0 %v1412, 112
      %v1428 = vpop.permute.xlu0 %1427
      %1437 = vst.msk [vmem:[%s143 + $0x9] sm:$0x1] %vm1050, %v1414
      %1438 = vst.msk [vmem:[%s143 + $0x19] sm:$0x1] %vm1050, %v1416
      %1439 = vst.msk [vmem:[%s143 + $0x29] sm:$0x1] %vm1050, %v1418
      %1440 = vst.msk [vmem:[%s143 + $0x39] sm:$0x1] %vm1050, %v1420
      %1441 = vst.msk [vmem:[%s143 + $0x49] sm:$0x1] %vm1050, %v1422
      %1442 = vst.msk [vmem:[%s143 + $0x59] sm:$0x1] %vm1050, %v1424
      %1443 = vst.msk [vmem:[%s143 + $0x69] sm:$0x1] %vm1050, %v1426
      %1444 = vst.msk [vmem:[%s143 + $0x79] sm:$0x1] %vm1050, %v1428
      %1445 = vrot.lane.b32.xlu0 %v1384, 96
      %v1446 = vpop.permute.xlu0 %1445
      %1447 = vrot.lane.b32.xlu0 %v1388, 96
      %v1448 = vpop.permute.xlu0 %1447
      %1449 = vrot.lane.b32.xlu0 %v1392, 96
      %v1450 = vpop.permute.xlu0 %1449
      %1451 = vrot.lane.b32.xlu0 %v1396, 96
      %v1452 = vpop.permute.xlu0 %1451
      %1453 = vrot.lane.b32.xlu0 %v1400, 96
      %v1454 = vpop.permute.xlu0 %1453
      %1455 = vrot.lane.b32.xlu0 %v1404, 96
      %v1456 = vpop.permute.xlu0 %1455
      %1457 = vrot.lane.b32.xlu0 %v1408, 96
      %v1458 = vpop.permute.xlu0 %1457
      %1459 = vrot.lane.b32.xlu0 %v1412, 96
      %v1460 = vpop.permute.xlu0 %1459
      %1469 = vst.msk [vmem:[%s143 + $0xa] sm:$0x1] %vm1050, %v1446
      %1470 = vst.msk [vmem:[%s143 + $0x1a] sm:$0x1] %vm1050, %v1448
      %1471 = vst.msk [vmem:[%s143 + $0x2a] sm:$0x1] %vm1050, %v1450
      %1472 = vst.msk [vmem:[%s143 + $0x3a] sm:$0x1] %vm1050, %v1452
      %1473 = vst.msk [vmem:[%s143 + $0x4a] sm:$0x1] %vm1050, %v1454
      %1474 = vst.msk [vmem:[%s143 + $0x5a] sm:$0x1] %vm1050, %v1456
      %1475 = vst.msk [vmem:[%s143 + $0x6a] sm:$0x1] %vm1050, %v1458
      %1476 = vst.msk [vmem:[%s143 + $0x7a] sm:$0x1] %vm1050, %v1460
      %1477 = vrot.lane.b32.xlu0 %v1384, 80
      %v1478 = vpop.permute.xlu0 %1477
      %1479 = vrot.lane.b32.xlu0 %v1388, 80
      %v1480 = vpop.permute.xlu0 %1479
      %1481 = vrot.lane.b32.xlu0 %v1392, 80
      %v1482 = vpop.permute.xlu0 %1481
      %1483 = vrot.lane.b32.xlu0 %v1396, 80
      %v1484 = vpop.permute.xlu0 %1483
      %1485 = vrot.lane.b32.xlu0 %v1400, 80
      %v1486 = vpop.permute.xlu0 %1485
      %1487 = vrot.lane.b32.xlu0 %v1404, 80
      %v1488 = vpop.permute.xlu0 %1487
      %1489 = vrot.lane.b32.xlu0 %v1408, 80
      %v1490 = vpop.permute.xlu0 %1489
      %1491 = vrot.lane.b32.xlu0 %v1412, 80
      %v1492 = vpop.permute.xlu0 %1491
      %1501 = vst.msk [vmem:[%s143 + $0xb] sm:$0x1] %vm1050, %v1478
      %1502 = vst.msk [vmem:[%s143 + $0x1b] sm:$0x1] %vm1050, %v1480
      %1503 = vst.msk [vmem:[%s143 + $0x2b] sm:$0x1] %vm1050, %v1482
      %1504 = vst.msk [vmem:[%s143 + $0x3b] sm:$0x1] %vm1050, %v1484
      %1505 = vst.msk [vmem:[%s143 + $0x4b] sm:$0x1] %vm1050, %v1486
      %1506 = vst.msk [vmem:[%s143 + $0x5b] sm:$0x1] %vm1050, %v1488
      %1507 = vst.msk [vmem:[%s143 + $0x6b] sm:$0x1] %vm1050, %v1490
      %1508 = vst.msk [vmem:[%s143 + $0x7b] sm:$0x1] %vm1050, %v1492
      %1509 = vrot.lane.b32.xlu0 %v1384, 64
      %v1510 = vpop.permute.xlu0 %1509
      %1511 = vrot.lane.b32.xlu0 %v1388, 64
      %v1512 = vpop.permute.xlu0 %1511
      %1513 = vrot.lane.b32.xlu0 %v1392, 64
      %v1514 = vpop.permute.xlu0 %1513
      %1515 = vrot.lane.b32.xlu0 %v1396, 64
      %v1516 = vpop.permute.xlu0 %1515
      %1517 = vrot.lane.b32.xlu0 %v1400, 64
      %v1518 = vpop.permute.xlu0 %1517
      %1519 = vrot.lane.b32.xlu0 %v1404, 64
      %v1520 = vpop.permute.xlu0 %1519
      %1521 = vrot.lane.b32.xlu0 %v1408, 64
      %v1522 = vpop.permute.xlu0 %1521
      %1523 = vrot.lane.b32.xlu0 %v1412, 64
      %v1524 = vpop.permute.xlu0 %1523
      %1533 = vst.msk [vmem:[%s143 + $0xc] sm:$0x1] %vm1050, %v1510
      %1534 = vst.msk [vmem:[%s143 + $0x1c] sm:$0x1] %vm1050, %v1512
      %1535 = vst.msk [vmem:[%s143 + $0x2c] sm:$0x1] %vm1050, %v1514
      %1536 = vst.msk [vmem:[%s143 + $0x3c] sm:$0x1] %vm1050, %v1516
      %1537 = vst.msk [vmem:[%s143 + $0x4c] sm:$0x1] %vm1050, %v1518
      %1538 = vst.msk [vmem:[%s143 + $0x5c] sm:$0x1] %vm1050, %v1520
      %1539 = vst.msk [vmem:[%s143 + $0x6c] sm:$0x1] %vm1050, %v1522
      %1540 = vst.msk [vmem:[%s143 + $0x7c] sm:$0x1] %vm1050, %v1524
      %1541 = vrot.lane.b32.xlu0 %v1384, 48
      %v1542 = vpop.permute.xlu0 %1541
      %1543 = vrot.lane.b32.xlu0 %v1388, 48
      %v1544 = vpop.permute.xlu0 %1543
      %1545 = vrot.lane.b32.xlu0 %v1392, 48
      %v1546 = vpop.permute.xlu0 %1545
      %1547 = vrot.lane.b32.xlu0 %v1396, 48
      %v1548 = vpop.permute.xlu0 %1547
      %1549 = vrot.lane.b32.xlu0 %v1400, 48
      %v1550 = vpop.permute.xlu0 %1549
      %1551 = vrot.lane.b32.xlu0 %v1404, 48
      %v1552 = vpop.permute.xlu0 %1551
      %1553 = vrot.lane.b32.xlu0 %v1408, 48
      %v1554 = vpop.permute.xlu0 %1553
      %1555 = vrot.lane.b32.xlu0 %v1412, 48
      %v1556 = vpop.permute.xlu0 %1555
      %1565 = vst.msk [vmem:[%s143 + $0xd] sm:$0x1] %vm1050, %v1542
      %1566 = vst.msk [vmem:[%s143 + $0x1d] sm:$0x1] %vm1050, %v1544
      %1567 = vst.msk [vmem:[%s143 + $0x2d] sm:$0x1] %vm1050, %v1546
      %1568 = vst.msk [vmem:[%s143 + $0x3d] sm:$0x1] %vm1050, %v1548
      %1569 = vst.msk [vmem:[%s143 + $0x4d] sm:$0x1] %vm1050, %v1550
      %1570 = vst.msk [vmem:[%s143 + $0x5d] sm:$0x1] %vm1050, %v1552
      %1571 = vst.msk [vmem:[%s143 + $0x6d] sm:$0x1] %vm1050, %v1554
      %1572 = vst.msk [vmem:[%s143 + $0x7d] sm:$0x1] %vm1050, %v1556
      %p1573 = scmp.lt.s32.totalorder %s13, 1
      %s1574 = scalar_select %p1573, %s13, 1
      %s1575 = smul.addr %s1574, 16
      %s1576 = smul.addr %s1575, 8
      %s1577 = scalar_lea.vmem %s2, %s1576
      // Predicated region
      $region29: #{tpu_custom_call.1} parent=27 // pred_check
        %p1578 = pneg %p78
      $region30: #{tpu_custom_call.1} parent=27 // pred_check_branch
        %1580 = sbr.rel (%p1578) target = $region32
      $region31: #{tpu_custom_call.1} parent=27 // pred_region
        _
      $region32: #{tpu_custom_call.1} parent=27 // pred_fallthru
        _
    $region28: #{tpu_custom_call.1} parent=5 // pred_fallthru
      _
    %p1581 = scmp.le.s32.totalorder 2, %s8
    // Predicated region
    $region33: #{tpu_custom_call.1} parent=5 // pred_check
      %p1582 = pneg %p1581
    $region34: #{tpu_custom_call.1} parent=5 // pred_check_branch
      %1584 = sbr.rel (%p1582) target = $region36
    $region35: #{tpu_custom_call.1} parent=5 // pred_region
      %s1585 = ssub.s32 %s8, 2
      // Predicated region
      $region37: #{tpu_custom_call.1} parent=35 // pred_check
        %p1586 = pneg %p84
      $region38: #{tpu_custom_call.1} parent=35 // pred_check_branch
        %1588 = sbr.rel (%p1586) target = $region40
      $region39: #{tpu_custom_call.1} parent=35 // pred_region
        %p1589 = scmp.lt.s32.totalorder %s14, 1
        %s1590 = scalar_select %p1589, %s14, 1
        %s1591 = smul.addr %s1590, 16
        %s1592 = smul.addr %s1591, 8
        %s1593 = scalar_lea.vmem %s2, %s1592
      $region40: #{tpu_custom_call.1} parent=35 // pred_fallthru
        _
    $region36: #{tpu_custom_call.1} parent=5 // pred_fallthru
      _
  $region6: #{tpu_custom_call.1} parent=0 // loop_footer
    %s12 = sadd.s32 1, %s8
  $region7: #{tpu_custom_call.1} parent=0 // loop_footer_branch
    %7 = sbr.rel target = $region3
  $region8: #{tpu_custom_call.1} parent=0 // loop_exit
    _

</llo_original>
